<compile_context>
chip_gen: v7x
topology: tpu7x:2x2x1
jax: 0.10.0
libtpu: 0.0.40
codegen_flags: <defaults>
</compile_context>

<pallas_src>
import functools
import math

import jax
import jax.numpy as jnp
from jax.experimental import pallas as pl
from jax.experimental.pallas import tpu as pltpu


# --------------------------------- kernel ---------------------------------- #

def _full_attention_kernel(*refs, scale, causal, has_mask, output_attention,
                           block_q, approx_recip):
    q_ref, k_ref, v_ref = refs[0], refs[1], refs[2]
    idx = 3
    m_ref = None
    if has_mask:
        m_ref = refs[idx]
        idx += 1
    o_ref = refs[idx]
    a_ref = refs[idx + 1] if output_attention else None

    tq, H, _ = q_ref.shape
    S = k_ref.shape[0]

    # Additive mask, shared across heads.  Causal case is generated in-kernel
    # (no HBM mask array, no VMEM mask buffer).
    if has_mask:
        mask_add = m_ref[...].astype(jnp.float32)
    elif causal:
        q0 = pl.program_id(1) * block_q
        row = q0 + jax.lax.broadcasted_iota(jnp.int32, (tq, S), 0)
        col = jax.lax.broadcasted_iota(jnp.int32, (tq, S), 1)
        mask_add = jnp.where(col > row, jnp.float32(-1e9), jnp.float32(0.0))
    else:
        mask_add = None

    scale_c = jnp.asarray(scale, q_ref.dtype)

    for h in range(H):                         # static unrolled head loop
        # fold 1/sqrt(E) into the small (tq, E) tile, not the (tq, S) scores
        q_h = q_ref[:, h, :] * scale_c
        k_h = k_ref[:, h, :]
        v_h = v_ref[:, h, :]

        # QK^T: contract last dims directly (no materialized transpose).
        s = jax.lax.dot_general(q_h, k_h, (((1,), (1,)), ((), ())),
                                preferred_element_type=jnp.float32)
        if mask_add is not None:
            s = s + mask_add

        # softmax (f32 math on every chip generation)
        s_max = jnp.max(s, axis=-1, keepdims=True)
        p = jnp.exp(s - s_max)
        denom = jnp.sum(p, axis=-1, keepdims=True)
        a = p * pl.reciprocal(denom, approx=approx_recip)

        if a_ref is not None:
            a_ref[h] = a.astype(a_ref.dtype)

        o = jax.lax.dot_general(a.astype(v_h.dtype), v_h,
                                (((1,), (0,)), ((), ())),
                                preferred_element_type=jnp.float32)
        o_ref[:, h, :] = o.astype(o_ref.dtype)


# --------------------------------- wrapper --------------------------------- #

def full_attention(queries, keys, values, attn_mask=None, *, mask_flag=True,
                   scale=None, output_attention=True,
                   compute_dtype=jnp.bfloat16, attn_dtype=jnp.float32,
                   block_q=256):
    """Informer FullAttention forward (eval mode) as a Pallas TPU kernel."""
    B, L, H, E = queries.shape
    _, S, _, D = values.shape
    assert keys.shape == (B, S, H, E)
    scale = float(scale) if scale is not None else 1.0 / math.sqrt(E)

    tq = min(block_q, L)
    nq = pl.cdiv(L, tq)
    out_dtype = queries.dtype

    # bf16 operands for the MXU (halves Q/K/V DMA bytes); accumulation stays f32.
    q = queries.astype(compute_dtype)
    k = keys.astype(compute_dtype)
    v = values.astype(compute_dtype)

    causal = False
    mask_arr = None
    if mask_flag:
        if attn_mask is None:
            causal = True                      # generated in-kernel
        else:
            m = jnp.asarray(attn_mask)
            if m.ndim == 2:                    # (L, S)
                m = m[None]
            elif m.ndim == 4:                  # (B, 1, L, S)
                m = m[:, 0]
            m = jnp.broadcast_to(m, (B, L, S))
            mask_arr = jnp.where(m, jnp.float32(-1e9), jnp.float32(0.0))
    has_mask = mask_arr is not None

    in_specs = [
        pl.BlockSpec((None, tq, H, E), lambda b, i: (b, i, 0, 0)),   # q tile
        pl.BlockSpec((None, S, H, E), lambda b, i: (b, 0, 0, 0)),    # k: held across q tiles
        pl.BlockSpec((None, S, H, D), lambda b, i: (b, 0, 0, 0)),    # v: held across q tiles
    ]
    args = [q, k, v]
    if has_mask:
        in_specs.append(pl.BlockSpec((None, tq, S), lambda b, i: (b, i, 0)))
        args.append(mask_arr)

    o_sds = jax.ShapeDtypeStruct((B, L, H, D), out_dtype)
    o_spec = pl.BlockSpec((None, tq, H, D), lambda b, i: (b, i, 0, 0))
    if output_attention:
        out_shape = (o_sds, jax.ShapeDtypeStruct((B, H, L, S), attn_dtype))
        out_specs = (o_spec,
                     pl.BlockSpec((None, H, tq, S), lambda b, i: (b, 0, i, 0)))
    else:
        out_shape = o_sds
        out_specs = o_spec

    kernel = functools.partial(
        _full_attention_kernel, scale=scale, causal=causal, has_mask=has_mask,
        output_attention=output_attention, block_q=tq,
        approx_recip=(jnp.dtype(compute_dtype) != jnp.dtype(jnp.float32)))

    res = pl.pallas_call(
        kernel,
        out_shape=out_shape,
        grid=(B, nq),
        in_specs=in_specs,
        out_specs=out_specs,
        compiler_params=pltpu.CompilerParams(
            dimension_semantics=("parallel", "parallel"),
            vmem_limit_bytes=48 * 1024 * 1024),   # fits v7x's 64 MiB VMEM too
    )(*args)

    if output_attention:
        out, attn = res
        return out, attn
    return res, None


# -------------------------------- reference -------------------------------- #

def reference_full_attention(queries, keys, values, attn_mask=None, *,
                             mask_flag=True, scale=None):
    B, L, H, E = queries.shape
    _, S, _, D = values.shape
    scale = scale if scale is not None else 1.0 / math.sqrt(E)
    scores = jnp.einsum('blhe,bshe->bhls', queries, keys,
                        precision=jax.lax.Precision.HIGHEST)
    if mask_flag:
        if attn_mask is None:
            mask = jnp.triu(jnp.ones((L, S), jnp.bool_), k=1)[None, None]
        else:
            mask = jnp.asarray(attn_mask)
            if mask.ndim == 2:
                mask = mask[None, None]
            elif mask.ndim == 3:
                mask = mask[:, None]
        scores = jnp.where(mask, -jnp.inf, scores)
    A = jax.nn.softmax(scale * scores, axis=-1)
    V = jnp.einsum('bhls,bshd->blhd', A, values,
                   precision=jax.lax.Precision.HIGHEST)
    return V, A


# ----------------------------------- main ----------------------------------- #

if __name__ == "__main__":
    # Tolerances: MXU matmuls may run with bf16-pass accumulation (default TPU
    # precision) while the reference uses HIGHEST precision, so allow a few %.
    TOL_F32 = dict(rtol=3e-2, atol=3e-2)
    TOL_BF16 = dict(rtol=5e-2, atol=5e-2)

    key = jax.random.PRNGKey(0)
    kq, kk, kv = jax.random.split(key, 3)

    # Small shapes consistent with the module: B=2, L=S=8, H=4, E=D=8 (d_model=32).
    B, L, S, H, E, D = 2, 8, 8, 4, 8, 8
    q = jax.random.normal(kq, (B, L, H, E), jnp.float32)
    k = jax.random.normal(kk, (B, S, H, E), jnp.float32)
    v = jax.random.normal(kv, (B, S, H, D), jnp.float32)

    ref_out, ref_attn = reference_full_attention(q, k, v, None, mask_flag=True)

    # 1) causal (mask_flag=True, attn_mask=None), f32 compute path.
    out, attn = full_attention(q, k, v, None, mask_flag=True,
                               output_attention=True, compute_dtype=jnp.float32)
    out = jax.block_until_ready(out)
    attn = jax.block_until_ready(attn)
    assert jnp.allclose(out, ref_out, **TOL_F32)
    assert jnp.allclose(attn, ref_attn, **TOL_F32)

    # 2) causal, bf16 matmul operands + bf16 attention map (perf path).
    out_bf, attn_bf = full_attention(q, k, v, None, mask_flag=True,
                                     output_attention=True,
                                     compute_dtype=jnp.bfloat16,
                                     attn_dtype=jnp.bfloat16)
    out_bf = jax.block_until_ready(out_bf)
    assert jnp.allclose(out_bf, ref_out, **TOL_BF16)
    assert jnp.allclose(attn_bf.astype(jnp.float32), ref_attn, **TOL_BF16)

    # 3) no mask, attention map skipped entirely (output_attention=False).
    out_nm, attn_nm = full_attention(q, k, v, None, mask_flag=False,
                                     output_attention=False,
                                     compute_dtype=jnp.float32)
    ref_out_nm, _ = reference_full_attention(q, k, v, None, mask_flag=False)
    assert attn_nm is None
    assert jnp.allclose(jax.block_until_ready(out_nm), ref_out_nm, **TOL_F32)

    # 4) explicit boolean mask (same causal mask passed by the caller).
    causal_mask = jnp.triu(jnp.ones((L, S), jnp.bool_), k=1)
    out_m, attn_m = full_attention(q, k, v, causal_mask, mask_flag=True,
                                   output_attention=True,
                                   compute_dtype=jnp.float32)
    assert jnp.allclose(jax.block_until_ready(out_m), ref_out, **TOL_F32)
    assert jnp.allclose(jax.block_until_ready(attn_m), ref_attn, **TOL_F32)

    # 5) multi-tile query grid (nq > 1): validates causal-mask row offsets per tile
    #    and K/V blocks being held across q-tiles.
    B2, L2, S2, H2, E2, D2 = 1, 128, 128, 2, 16, 16
    k2q, k2k, k2v = jax.random.split(jax.random.PRNGKey(1), 3)
    q2 = jax.random.normal(k2q, (B2, L2, H2, E2), jnp.float32)
    k2 = jax.random.normal(k2k, (B2, S2, H2, E2), jnp.float32)
    v2 = jax.random.normal(k2v, (B2, S2, H2, D2), jnp.float32)
    out2, attn2 = full_attention(q2, k2, v2, None, mask_flag=True,
                                 output_attention=True,
                                 compute_dtype=jnp.float32, block_q=64)
    ref_out2, ref_attn2 = reference_full_attention(q2, k2, v2, None, mask_flag=True)
    assert jnp.allclose(jax.block_until_ready(out2), ref_out2, **TOL_F32)
    assert jnp.allclose(jax.block_until_ready(attn2), ref_attn2, **TOL_F32)

    print("KERNEL_OK")
</pallas_src>

<mosaic_0001>
module attributes {stable_mosaic.version = 11 : i64} {
  func.func @_full_attention_kernel(%arg0: i32, %arg1: i32, %arg2: memref<1x8x4x8xf32, #tpu.memory_space<vmem>>, %arg3: memref<1x8x4x8xf32, #tpu.memory_space<vmem>>, %arg4: memref<1x8x4x8xf32, #tpu.memory_space<vmem>>, %arg5: memref<1x8x4x8xf32, #tpu.memory_space<vmem>>, %arg6: memref<1x4x8x8xf32, #tpu.memory_space<vmem>>) attributes {dimension_semantics = [#tpu.dimension_semantics<parallel>, #tpu.dimension_semantics<parallel>], iteration_bounds = array<i64: 2, 1>, scalar_prefetch = 0 : i64, scratch_operands = 0 : i64, tpu.core_type = #tpu.core_type<tc>, window_params = [{transform_indices = @transform_0, window_bounds = array<i64: 1, 8, 4, 8>}, {transform_indices = @transform_1, window_bounds = array<i64: 1, 8, 4, 8>}, {transform_indices = @transform_2, window_bounds = array<i64: 1, 8, 4, 8>}, {transform_indices = @transform_3, window_bounds = array<i64: 1, 8, 4, 8>}, {transform_indices = @transform_4, window_bounds = array<i64: 1, 4, 8, 8>}]} {
    %c8_i32 = arith.constant 8 : i32
    %0 = arith.muli %arg1, %c8_i32 : i32
    %1 = tpu.iota {dimensions = array<i32: 0>} : vector<8x8xi32>
    %2 = vector.broadcast %0 : i32 to vector<8x8xi32>
    %3 = arith.addi %2, %1 : vector<8x8xi32>
    %4 = tpu.iota {dimensions = array<i32: 1>} : vector<8x8xi32>
    %5 = arith.cmpi sgt, %4, %3 : vector<8x8xi32>
    %cst = arith.constant -1.000000e+09 : f32
    %cst_0 = arith.constant 0.000000e+00 : f32
    %6 = vector.broadcast %cst : f32 to vector<8x8xf32>
    %7 = vector.broadcast %cst_0 : f32 to vector<8x8xf32>
    %8 = arith.select %5, %6, %7 : vector<8x8xi1>, vector<8x8xf32>
    %c0 = arith.constant 0 : index
    %c0_1 = arith.constant 0 : index
    %c0_2 = arith.constant 0 : index
    %c0_3 = arith.constant 0 : index
    %9 = vector.load %arg2[%c0, %c0_1, %c0_2, %c0_3] : memref<1x8x4x8xf32, #tpu.memory_space<vmem>>, vector<1x8x1x8xf32>
    %10 = vector.shape_cast %9 : vector<1x8x1x8xf32> to vector<8x8xf32>
    %cst_4 = arith.constant 0.353553385 : f32
    %11 = vector.broadcast %cst_4 : f32 to vector<8x8xf32>
    %12 = arith.mulf %10, %11 : vector<8x8xf32>
    %c0_5 = arith.constant 0 : index
    %c0_6 = arith.constant 0 : index
    %c0_7 = arith.constant 0 : index
    %c0_8 = arith.constant 0 : index
    %13 = vector.load %arg3[%c0_5, %c0_6, %c0_7, %c0_8] : memref<1x8x4x8xf32, #tpu.memory_space<vmem>>, vector<1x8x1x8xf32>
    %14 = vector.shape_cast %13 : vector<1x8x1x8xf32> to vector<8x8xf32>
    %c0_9 = arith.constant 0 : index
    %c0_10 = arith.constant 0 : index
    %c0_11 = arith.constant 0 : index
    %c0_12 = arith.constant 0 : index
    %15 = vector.load %arg4[%c0_9, %c0_10, %c0_11, %c0_12] : memref<1x8x4x8xf32, #tpu.memory_space<vmem>>, vector<1x8x1x8xf32>
    %16 = vector.shape_cast %15 : vector<1x8x1x8xf32> to vector<8x8xf32>
    %cst_13 = arith.constant dense<0.000000e+00> : vector<8x8xf32>
    %17 = tpu.matmul %12, %14, %cst_13 {dimension_numbers = #tpu.dot_dimension_numbers<[1], [1], [0], [0], [0, 0, 1, 0], [], []>} : vector<8x8xf32>, vector<8x8xf32>, vector<8x8xf32> -> vector<8x8xf32>
    %18 = arith.addf %17, %8 : vector<8x8xf32>
    %cst_14 = arith.constant dense<0xFF800000> : vector<8xf32>
    %19 = vector.multi_reduction <maximumf>, %18, %cst_14 [1] : vector<8x8xf32> to vector<8xf32>
    %20 = vector.shape_cast %19 : vector<8xf32> to vector<8x1xf32>
    %21 = vector.broadcast %20 : vector<8x1xf32> to vector<8x8xf32>
    %22 = arith.subf %18, %21 : vector<8x8xf32>
    %23 = math.exp %22 : vector<8x8xf32>
    %cst_15 = arith.constant dense<0.000000e+00> : vector<8xf32>
    %24 = vector.multi_reduction <add>, %23, %cst_15 [1] : vector<8x8xf32> to vector<8xf32>
    %25 = vector.shape_cast %24 : vector<8xf32> to vector<8x1xf32>
    %26 = tpu.reciprocal %25 : vector<8x1xf32> -> vector<8x1xf32>
    %27 = vector.broadcast %26 : vector<8x1xf32> to vector<8x8xf32>
    %28 = arith.mulf %23, %27 : vector<8x8xf32>
    %c0_16 = arith.constant 0 : index
    %c0_17 = arith.constant 0 : index
    %c0_18 = arith.constant 0 : index
    %c0_19 = arith.constant 0 : index
    %29 = vector.load %arg6[%c0_16, %c0_17, %c0_18, %c0_19] : memref<1x4x8x8xf32, #tpu.memory_space<vmem>>, vector<1x1x8x8xf32>
    %30 = vector.shape_cast %29 : vector<1x1x8x8xf32> to vector<8x8xf32>
    %31 = vector.shape_cast %28 : vector<8x8xf32> to vector<1x1x8x8xf32>
    tpu.vector_store %arg6[%c0_16, %c0_17, %c0_18, %c0_19], %31 {strides = array<i32>} : memref<1x4x8x8xf32, #tpu.memory_space<vmem>>, vector<1x1x8x8xf32>,
    %cst_20 = arith.constant dense<0.000000e+00> : vector<8x8xf32>
    %32 = tpu.matmul %28, %16, %cst_20 {dimension_numbers = #tpu.dot_dimension_numbers<[1], [0], [0], [1], [0, 0, 1, 1], [], []>} : vector<8x8xf32>, vector<8x8xf32>, vector<8x8xf32> -> vector<8x8xf32>
    %c0_21 = arith.constant 0 : index
    %c0_22 = arith.constant 0 : index
    %c0_23 = arith.constant 0 : index
    %c0_24 = arith.constant 0 : index
    %33 = vector.load %arg5[%c0_21, %c0_22, %c0_23, %c0_24] : memref<1x8x4x8xf32, #tpu.memory_space<vmem>>, vector<1x8x1x8xf32>
    %34 = vector.shape_cast %33 : vector<1x8x1x8xf32> to vector<8x8xf32>
    %35 = vector.shape_cast %32 : vector<8x8xf32> to vector<1x8x1x8xf32>
    tpu.vector_store %arg5[%c0_21, %c0_22, %c0_23, %c0_24], %35 {strides = array<i32>} : memref<1x8x4x8xf32, #tpu.memory_space<vmem>>, vector<1x8x1x8xf32>,
    %c0_25 = arith.constant 0 : index
    %c0_26 = arith.constant 0 : index
    %c1 = arith.constant 1 : index
    %c0_27 = arith.constant 0 : index
    %36 = vector.load %arg2[%c0_25, %c0_26, %c1, %c0_27] : memref<1x8x4x8xf32, #tpu.memory_space<vmem>>, vector<1x8x1x8xf32>
    %37 = vector.shape_cast %36 : vector<1x8x1x8xf32> to vector<8x8xf32>
    %cst_28 = arith.constant 0.353553385 : f32
    %38 = vector.broadcast %cst_28 : f32 to vector<8x8xf32>
    %39 = arith.mulf %37, %38 : vector<8x8xf32>
    %c0_29 = arith.constant 0 : index
    %c0_30 = arith.constant 0 : index
    %c1_31 = arith.constant 1 : index
    %c0_32 = arith.constant 0 : index
    %40 = vector.load %arg3[%c0_29, %c0_30, %c1_31, %c0_32] : memref<1x8x4x8xf32, #tpu.memory_space<vmem>>, vector<1x8x1x8xf32>
    %41 = vector.shape_cast %40 : vector<1x8x1x8xf32> to vector<8x8xf32>
    %c0_33 = arith.constant 0 : index
    %c0_34 = arith.constant 0 : index
    %c1_35 = arith.constant 1 : index
    %c0_36 = arith.constant 0 : index
    %42 = vector.load %arg4[%c0_33, %c0_34, %c1_35, %c0_36] : memref<1x8x4x8xf32, #tpu.memory_space<vmem>>, vector<1x8x1x8xf32>
    %43 = vector.shape_cast %42 : vector<1x8x1x8xf32> to vector<8x8xf32>
    %cst_37 = arith.constant dense<0.000000e+00> : vector<8x8xf32>
    %44 = tpu.matmul %39, %41, %cst_37 {dimension_numbers = #tpu.dot_dimension_numbers<[1], [1], [0], [0], [0, 0, 1, 0], [], []>} : vector<8x8xf32>, vector<8x8xf32>, vector<8x8xf32> -> vector<8x8xf32>
    %45 = arith.addf %44, %8 : vector<8x8xf32>
    %cst_38 = arith.constant dense<0xFF800000> : vector<8xf32>
    %46 = vector.multi_reduction <maximumf>, %45, %cst_38 [1] : vector<8x8xf32> to vector<8xf32>
    %47 = vector.shape_cast %46 : vector<8xf32> to vector<8x1xf32>
    %48 = vector.broadcast %47 : vector<8x1xf32> to vector<8x8xf32>
    %49 = arith.subf %45, %48 : vector<8x8xf32>
    %50 = math.exp %49 : vector<8x8xf32>
    %cst_39 = arith.constant dense<0.000000e+00> : vector<8xf32>
    %51 = vector.multi_reduction <add>, %50, %cst_39 [1] : vector<8x8xf32> to vector<8xf32>
    %52 = vector.shape_cast %51 : vector<8xf32> to vector<8x1xf32>
    %53 = tpu.reciprocal %52 : vector<8x1xf32> -> vector<8x1xf32>
    %54 = vector.broadcast %53 : vector<8x1xf32> to vector<8x8xf32>
    %55 = arith.mulf %50, %54 : vector<8x8xf32>
    %c0_40 = arith.constant 0 : index
    %c1_41 = arith.constant 1 : index
    %c0_42 = arith.constant 0 : index
    %c0_43 = arith.constant 0 : index
    %56 = vector.load %arg6[%c0_40, %c1_41, %c0_42, %c0_43] : memref<1x4x8x8xf32, #tpu.memory_space<vmem>>, vector<1x1x8x8xf32>
    %57 = vector.shape_cast %56 : vector<1x1x8x8xf32> to vector<8x8xf32>
    %58 = vector.shape_cast %55 : vector<8x8xf32> to vector<1x1x8x8xf32>
    tpu.vector_store %arg6[%c0_40, %c1_41, %c0_42, %c0_43], %58 {strides = array<i32>} : memref<1x4x8x8xf32, #tpu.memory_space<vmem>>, vector<1x1x8x8xf32>,
    %cst_44 = arith.constant dense<0.000000e+00> : vector<8x8xf32>
    %59 = tpu.matmul %55, %43, %cst_44 {dimension_numbers = #tpu.dot_dimension_numbers<[1], [0], [0], [1], [0, 0, 1, 1], [], []>} : vector<8x8xf32>, vector<8x8xf32>, vector<8x8xf32> -> vector<8x8xf32>
    %c0_45 = arith.constant 0 : index
    %c0_46 = arith.constant 0 : index
    %c1_47 = arith.constant 1 : index
    %c0_48 = arith.constant 0 : index
    %60 = vector.load %arg5[%c0_45, %c0_46, %c1_47, %c0_48] : memref<1x8x4x8xf32, #tpu.memory_space<vmem>>, vector<1x8x1x8xf32>
    %61 = vector.shape_cast %60 : vector<1x8x1x8xf32> to vector<8x8xf32>
    %62 = vector.shape_cast %59 : vector<8x8xf32> to vector<1x8x1x8xf32>
    tpu.vector_store %arg5[%c0_45, %c0_46, %c1_47, %c0_48], %62 {strides = array<i32>} : memref<1x8x4x8xf32, #tpu.memory_space<vmem>>, vector<1x8x1x8xf32>,
    %c0_49 = arith.constant 0 : index
    %c0_50 = arith.constant 0 : index
    %c2 = arith.constant 2 : index
    %c0_51 = arith.constant 0 : index
    %63 = vector.load %arg2[%c0_49, %c0_50, %c2, %c0_51] : memref<1x8x4x8xf32, #tpu.memory_space<vmem>>, vector<1x8x1x8xf32>
    %64 = vector.shape_cast %63 : vector<1x8x1x8xf32> to vector<8x8xf32>
    %cst_52 = arith.constant 0.353553385 : f32
    %65 = vector.broadcast %cst_52 : f32 to vector<8x8xf32>
    %66 = arith.mulf %64, %65 : vector<8x8xf32>
    %c0_53 = arith.constant 0 : index
    %c0_54 = arith.constant 0 : index
    %c2_55 = arith.constant 2 : index
    %c0_56 = arith.constant 0 : index
    %67 = vector.load %arg3[%c0_53, %c0_54, %c2_55, %c0_56] : memref<1x8x4x8xf32, #tpu.memory_space<vmem>>, vector<1x8x1x8xf32>
    %68 = vector.shape_cast %67 : vector<1x8x1x8xf32> to vector<8x8xf32>
    %c0_57 = arith.constant 0 : index
    %c0_58 = arith.constant 0 : index
    %c2_59 = arith.constant 2 : index
    %c0_60 = arith.constant 0 : index
    %69 = vector.load %arg4[%c0_57, %c0_58, %c2_59, %c0_60] : memref<1x8x4x8xf32, #tpu.memory_space<vmem>>, vector<1x8x1x8xf32>
    %70 = vector.shape_cast %69 : vector<1x8x1x8xf32> to vector<8x8xf32>
    %cst_61 = arith.constant dense<0.000000e+00> : vector<8x8xf32>
    %71 = tpu.matmul %66, %68, %cst_61 {dimension_numbers = #tpu.dot_dimension_numbers<[1], [1], [0], [0], [0, 0, 1, 0], [], []>} : vector<8x8xf32>, vector<8x8xf32>, vector<8x8xf32> -> vector<8x8xf32>
    %72 = arith.addf %71, %8 : vector<8x8xf32>
    %cst_62 = arith.constant dense<0xFF800000> : vector<8xf32>
    %73 = vector.multi_reduction <maximumf>, %72, %cst_62 [1] : vector<8x8xf32> to vector<8xf32>
    %74 = vector.shape_cast %73 : vector<8xf32> to vector<8x1xf32>
    %75 = vector.broadcast %74 : vector<8x1xf32> to vector<8x8xf32>
    %76 = arith.subf %72, %75 : vector<8x8xf32>
    %77 = math.exp %76 : vector<8x8xf32>
    %cst_63 = arith.constant dense<0.000000e+00> : vector<8xf32>
    %78 = vector.multi_reduction <add>, %77, %cst_63 [1] : vector<8x8xf32> to vector<8xf32>
    %79 = vector.shape_cast %78 : vector<8xf32> to vector<8x1xf32>
    %80 = tpu.reciprocal %79 : vector<8x1xf32> -> vector<8x1xf32>
    %81 = vector.broadcast %80 : vector<8x1xf32> to vector<8x8xf32>
    %82 = arith.mulf %77, %81 : vector<8x8xf32>
    %c0_64 = arith.constant 0 : index
    %c2_65 = arith.constant 2 : index
    %c0_66 = arith.constant 0 : index
    %c0_67 = arith.constant 0 : index
    %83 = vector.load %arg6[%c0_64, %c2_65, %c0_66, %c0_67] : memref<1x4x8x8xf32, #tpu.memory_space<vmem>>, vector<1x1x8x8xf32>
    %84 = vector.shape_cast %83 : vector<1x1x8x8xf32> to vector<8x8xf32>
    %85 = vector.shape_cast %82 : vector<8x8xf32> to vector<1x1x8x8xf32>
    tpu.vector_store %arg6[%c0_64, %c2_65, %c0_66, %c0_67], %85 {strides = array<i32>} : memref<1x4x8x8xf32, #tpu.memory_space<vmem>>, vector<1x1x8x8xf32>,
    %cst_68 = arith.constant dense<0.000000e+00> : vector<8x8xf32>
    %86 = tpu.matmul %82, %70, %cst_68 {dimension_numbers = #tpu.dot_dimension_numbers<[1], [0], [0], [1], [0, 0, 1, 1], [], []>} : vector<8x8xf32>, vector<8x8xf32>, vector<8x8xf32> -> vector<8x8xf32>
    %c0_69 = arith.constant 0 : index
    %c0_70 = arith.constant 0 : index
    %c2_71 = arith.constant 2 : index
    %c0_72 = arith.constant 0 : index
    %87 = vector.load %arg5[%c0_69, %c0_70, %c2_71, %c0_72] : memref<1x8x4x8xf32, #tpu.memory_space<vmem>>, vector<1x8x1x8xf32>
    %88 = vector.shape_cast %87 : vector<1x8x1x8xf32> to vector<8x8xf32>
    %89 = vector.shape_cast %86 : vector<8x8xf32> to vector<1x8x1x8xf32>
    tpu.vector_store %arg5[%c0_69, %c0_70, %c2_71, %c0_72], %89 {strides = array<i32>} : memref<1x8x4x8xf32, #tpu.memory_space<vmem>>, vector<1x8x1x8xf32>,
    %c0_73 = arith.constant 0 : index
    %c0_74 = arith.constant 0 : index
    %c3 = arith.constant 3 : index
    %c0_75 = arith.constant 0 : index
    %90 = vector.load %arg2[%c0_73, %c0_74, %c3, %c0_75] : memref<1x8x4x8xf32, #tpu.memory_space<vmem>>, vector<1x8x1x8xf32>
    %91 = vector.shape_cast %90 : vector<1x8x1x8xf32> to vector<8x8xf32>
    %cst_76 = arith.constant 0.353553385 : f32
    %92 = vector.broadcast %cst_76 : f32 to vector<8x8xf32>
    %93 = arith.mulf %91, %92 : vector<8x8xf32>
    %c0_77 = arith.constant 0 : index
    %c0_78 = arith.constant 0 : index
    %c3_79 = arith.constant 3 : index
    %c0_80 = arith.constant 0 : index
    %94 = vector.load %arg3[%c0_77, %c0_78, %c3_79, %c0_80] : memref<1x8x4x8xf32, #tpu.memory_space<vmem>>, vector<1x8x1x8xf32>
    %95 = vector.shape_cast %94 : vector<1x8x1x8xf32> to vector<8x8xf32>
    %c0_81 = arith.constant 0 : index
    %c0_82 = arith.constant 0 : index
    %c3_83 = arith.constant 3 : index
    %c0_84 = arith.constant 0 : index
    %96 = vector.load %arg4[%c0_81, %c0_82, %c3_83, %c0_84] : memref<1x8x4x8xf32, #tpu.memory_space<vmem>>, vector<1x8x1x8xf32>
    %97 = vector.shape_cast %96 : vector<1x8x1x8xf32> to vector<8x8xf32>
    %cst_85 = arith.constant dense<0.000000e+00> : vector<8x8xf32>
    %98 = tpu.matmul %93, %95, %cst_85 {dimension_numbers = #tpu.dot_dimension_numbers<[1], [1], [0], [0], [0, 0, 1, 0], [], []>} : vector<8x8xf32>, vector<8x8xf32>, vector<8x8xf32> -> vector<8x8xf32>
    %99 = arith.addf %98, %8 : vector<8x8xf32>
    %cst_86 = arith.constant dense<0xFF800000> : vector<8xf32>
    %100 = vector.multi_reduction <maximumf>, %99, %cst_86 [1] : vector<8x8xf32> to vector<8xf32>
    %101 = vector.shape_cast %100 : vector<8xf32> to vector<8x1xf32>
    %102 = vector.broadcast %101 : vector<8x1xf32> to vector<8x8xf32>
    %103 = arith.subf %99, %102 : vector<8x8xf32>
    %104 = math.exp %103 : vector<8x8xf32>
    %cst_87 = arith.constant dense<0.000000e+00> : vector<8xf32>
    %105 = vector.multi_reduction <add>, %104, %cst_87 [1] : vector<8x8xf32> to vector<8xf32>
    %106 = vector.shape_cast %105 : vector<8xf32> to vector<8x1xf32>
    %107 = tpu.reciprocal %106 : vector<8x1xf32> -> vector<8x1xf32>
    %108 = vector.broadcast %107 : vector<8x1xf32> to vector<8x8xf32>
    %109 = arith.mulf %104, %108 : vector<8x8xf32>
    %c0_88 = arith.constant 0 : index
    %c3_89 = arith.constant 3 : index
    %c0_90 = arith.constant 0 : index
    %c0_91 = arith.constant 0 : index
    %110 = vector.load %arg6[%c0_88, %c3_89, %c0_90, %c0_91] : memref<1x4x8x8xf32, #tpu.memory_space<vmem>>, vector<1x1x8x8xf32>
    %111 = vector.shape_cast %110 : vector<1x1x8x8xf32> to vector<8x8xf32>
    %112 = vector.shape_cast %109 : vector<8x8xf32> to vector<1x1x8x8xf32>
    tpu.vector_store %arg6[%c0_88, %c3_89, %c0_90, %c0_91], %112 {strides = array<i32>} : memref<1x4x8x8xf32, #tpu.memory_space<vmem>>, vector<1x1x8x8xf32>,
    %cst_92 = arith.constant dense<0.000000e+00> : vector<8x8xf32>
    %113 = tpu.matmul %109, %97, %cst_92 {dimension_numbers = #tpu.dot_dimension_numbers<[1], [0], [0], [1], [0, 0, 1, 1], [], []>} : vector<8x8xf32>, vector<8x8xf32>, vector<8x8xf32> -> vector<8x8xf32>
    %c0_93 = arith.constant 0 : index
    %c0_94 = arith.constant 0 : index
    %c3_95 = arith.constant 3 : index
    %c0_96 = arith.constant 0 : index
    %114 = vector.load %arg5[%c0_93, %c0_94, %c3_95, %c0_96] : memref<1x8x4x8xf32, #tpu.memory_space<vmem>>, vector<1x8x1x8xf32>
    %115 = vector.shape_cast %114 : vector<1x8x1x8xf32> to vector<8x8xf32>
    %116 = vector.shape_cast %113 : vector<8x8xf32> to vector<1x8x1x8xf32>
    tpu.vector_store %arg5[%c0_93, %c0_94, %c3_95, %c0_96], %116 {strides = array<i32>} : memref<1x8x4x8xf32, #tpu.memory_space<vmem>>, vector<1x8x1x8xf32>,
    return
  }
  func.func @transform_0(%arg0: i32, %arg1: i32) -> (i32, i32, i32, i32) {
    %c0_i32 = arith.constant 0 : i32
    %c0_i32_0 = arith.constant 0 : i32
    %c0_i32_1 = arith.constant 0 : i32
    return %arg0, %arg1, %c0_i32, %c0_i32_0 : i32, i32, i32, i32
  }
  func.func @transform_1(%arg0: i32, %arg1: i32) -> (i32, i32, i32, i32) {
    %c0_i32 = arith.constant 0 : i32
    %c0_i32_0 = arith.constant 0 : i32
    %c0_i32_1 = arith.constant 0 : i32
    %c0_i32_2 = arith.constant 0 : i32
    return %arg0, %c0_i32, %c0_i32_0, %c0_i32_1 : i32, i32, i32, i32
  }
  func.func @transform_2(%arg0: i32, %arg1: i32) -> (i32, i32, i32, i32) {
    %c0_i32 = arith.constant 0 : i32
    %c0_i32_0 = arith.constant 0 : i32
    %c0_i32_1 = arith.constant 0 : i32
    %c0_i32_2 = arith.constant 0 : i32
    return %arg0, %c0_i32, %c0_i32_0, %c0_i32_1 : i32, i32, i32, i32
  }
  func.func @transform_3(%arg0: i32, %arg1: i32) -> (i32, i32, i32, i32) {
    %c0_i32 = arith.constant 0 : i32
    %c0_i32_0 = arith.constant 0 : i32
    %c0_i32_1 = arith.constant 0 : i32
    return %arg0, %arg1, %c0_i32, %c0_i32_0 : i32, i32, i32, i32
  }
  func.func @transform_4(%arg0: i32, %arg1: i32) -> (i32, i32, i32, i32) {
    %c0_i32 = arith.constant 0 : i32
    %c0_i32_0 = arith.constant 0 : i32
    %c0_i32_1 = arith.constant 0 : i32
    return %arg0, %c0_i32, %arg1, %c0_i32_0 : i32, i32, i32, i32
  }
}

</mosaic_0001>

<llo_original>
// kernel: tpu_custom_call.1
$region0: #{tpu_custom_call.1}
  #allocation0 [shape = 'u32[]', space=smem, size = 0x4, offset = 0x4, fixed_abs, tag = 'smem constant byte address 0x4 - core index']
  #allocation1 [shape = 'u32[144,128]{1,0:T(1,128)}', space=vmem, size = 0x12000, scoped, tag = 'internal scratch']
  %s0 = inlined_call_operand.hbm [shape: f32[2,8,4,8], index: 0, kind: input, shape index: {}]
  %s1 = inlined_call_operand.hbm [shape: f32[2,8,4,8], index: 1, kind: input, shape index: {}]
  %s2 = inlined_call_operand.hbm [shape: f32[2,8,4,8], index: 2, kind: input, shape index: {}]
  %s3 = inlined_call_operand.hbm [shape: f32[2,8,4,8], index: 3, kind: output, shape index: {0}]
  %s4 = inlined_call_operand.hbm [shape: f32[2,4,8,8], index: 4, kind: output, shape index: {1}]
  %5 = xla_tuple %s3, %s4
  %s6 = sld [smem:[#allocation0]]
  $region65: #{tpu_custom_call.1} parent=0
    _
  %s8 = ssub.s32 1, %s6
  %s9 = scalar_select 0, %s8, %s6
  $region1: #{tpu_custom_call.1} parent=0
    #allocation2 [shape = 'u8[32768]{0}', space=vmem, size = 0x8000, scoped, tag = 'input window, operand 0']
    #allocation3 [shape = 's32[2]{0}', space=sflag, size = 0x8, scoped, tag = 'scoped memory for tpu_custom_call.1']
    #allocation4 [shape = 's32[2]{0}', space=sflag, size = 0x8, scoped, tag = 'scoped memory for tpu_custom_call.1']
    #allocation5 [shape = 'u8[32768]{0}', space=vmem, size = 0x8000, scoped, tag = 'input window, operand 1']
    #allocation6 [shape = 's32[2]{0}', space=sflag, size = 0x8, scoped, tag = 'scoped memory for tpu_custom_call.1']
    #allocation7 [shape = 'u8[32768]{0}', space=vmem, size = 0x8000, scoped, tag = 'input window, operand 2']
    #allocation8 [shape = 'u8[32768]{0}', space=vmem, size = 0x8000, scoped, tag = 'output window, operand 0']
    #allocation9 [shape = 'u8[32768]{0}', space=vmem, size = 0x8000, scoped, tag = 'output window, operand 1']
    #allocation10 [shape = 's32[2]{0}', space=sflag, size = 0x8, scoped, tag = 'scoped memory for tpu_custom_call.1']
    %10 = vsyncpa [#allocation3], 0
    %s11 = scalar_lea.sflag [#allocation3], 1
    %12 = vsyncpa %s11, 0
    %13 = vsyncpa [#allocation6], 0
    %s14 = scalar_lea.sflag [#allocation6], 1
    %15 = vsyncpa %s14, 0
    %16 = vsyncpa [#allocation4], 0
    %s17 = scalar_lea.sflag [#allocation4], 1
    %18 = vsyncpa %s17, 0
    %19 = vsyncpa [#allocation10], 0
    %s20 = scalar_lea.sflag [#allocation10], 1
    %21 = vsyncpa %s20, 0
    loop: start=0, step=1, limit=4
    $region2: #{tpu_custom_call.1} parent=1 // loop_pre_header
      _
    $region3: #{tpu_custom_call.1} parent=1 // loop_header
      %s23 = sphi 0, %s27
      %p24 = scmp.ge.s32.totalorder %s23, 4
      %s30 = sphi 0, %s42
      %s31 = sphi 0, %s38
      %s32 = sphi 0, %s30
      %s33 = sphi 0, %s31
      %s34 = sphi 0, %s32
      %s35 = sphi 0, %s33
      %s47 = sphi 0, %s49
      %s50 = sphi 0, %s47
      %s51 = sphi 0, %s50
      %s67 = sphi 0, %s51
      %s73 = sphi 0, %s75
      %s76 = sphi 0, %s73
      %s77 = sphi 0, %s76
      %s93 = sphi 0, %s77
      %s99 = sphi 0, %s101
      %s102 = sphi 0, %s99
      %s103 = sphi 0, %s102
      %s119 = sphi 0, %s103
      %s127 = sphi 0, %s129
      %s130 = sphi 0, %s127
      %s131 = sphi 0, %s130
      %s147 = sphi 0, %s131
      %s155 = sphi 0, %s157
      %s158 = sphi 0, %s155
      %s159 = sphi 0, %s158
      %s175 = sphi 0, %s159
    $region4: #{tpu_custom_call.1} parent=1 // loop_header_branch
      %26 = sbr.rel (%p24) target = $region8
    $region5: #{tpu_custom_call.1} parent=1 // loop_body
      %s28 = ssub.s32 %s23, 1
      %s29 = ssub.s32 %s23, 2
      %s36 = sadd.s32 1, %s31
      %p37 = scmp.ge.s32.totalorder %s36, 1
      %s38 = scalar_select %p37, 0, %s36
      %s39 = sadd.s32 1, %s30
      %s40 = scalar_select %p37, %s39, %s30
      %p41 = scmp.ge.s32.totalorder %s40, 2
      %s42 = scalar_select %p41, 0, %s40
      %s43 = ssub.s32 %s30, %s42
      %s44 = ssub.s32 %s31, %s38
      %s45 = sor.u32 %s43, %s44
      %p46 = scmp.eq.s32.totalorder %s45, 0
      %s48 = sadd.s32 %s47, 1
      %s49 = scalar_select %p46, %s47, %s48
      %p52 = pneg %p46
      %p53 = scmp.eq.s32.totalorder %s23, 1
      %p54 = por %p52, %p53
      %p55 = scmp.ne.s32.totalorder %s47, %s50
      %p56 = scmp.eq.s32.totalorder %s23, 0
      %p57 = por %p55, %p56
      %p58 = scmp.ne.s32.totalorder %s47, %s50
      %p59 = scmp.eq.s32.totalorder %s28, 1
      %p60 = por %p58, %p59
      %p61 = scmp.ne.s32.totalorder %s50, %s51
      %p62 = scmp.eq.s32.totalorder %s28, 0
      %p63 = por %p61, %p62
      %p64 = scmp.ne.s32.totalorder %s50, %s51
      %p65 = scmp.eq.s32.totalorder %s29, 1
      %p66 = por %p64, %p65
      %p68 = scmp.ne.s32.totalorder %s51, %s67
      %p69 = scmp.eq.s32.totalorder %s29, 0
      %p70 = por %p68, %p69
      %s71 = ssub.s32 %s30, %s42
      %p72 = scmp.eq.s32.totalorder %s71, 0
      %s74 = sadd.s32 %s73, 1
      %s75 = scalar_select %p72, %s73, %s74
      %p78 = pneg %p72
      %p79 = scmp.eq.s32.totalorder %s23, 1
      %p80 = por %p78, %p79
      %p81 = scmp.ne.s32.totalorder %s73, %s76
      %p82 = scmp.eq.s32.totalorder %s23, 0
      %p83 = por %p81, %p82
      %p84 = scmp.ne.s32.totalorder %s73, %s76
      %p85 = scmp.eq.s32.totalorder %s28, 1
      %p86 = por %p84, %p85
      %p87 = scmp.ne.s32.totalorder %s76, %s77
      %p88 = scmp.eq.s32.totalorder %s28, 0
      %p89 = por %p87, %p88
      %p90 = scmp.ne.s32.totalorder %s76, %s77
      %p91 = scmp.eq.s32.totalorder %s29, 1
      %p92 = por %p90, %p91
      %p94 = scmp.ne.s32.totalorder %s77, %s93
      %p95 = scmp.eq.s32.totalorder %s29, 0
      %p96 = por %p94, %p95
      %s97 = ssub.s32 %s30, %s42
      %p98 = scmp.eq.s32.totalorder %s97, 0
      %s100 = sadd.s32 %s99, 1
      %s101 = scalar_select %p98, %s99, %s100
      %p104 = pneg %p98
      %p105 = scmp.eq.s32.totalorder %s23, 1
      %p106 = por %p104, %p105
      %p107 = scmp.ne.s32.totalorder %s99, %s102
      %p108 = scmp.eq.s32.totalorder %s23, 0
      %p109 = por %p107, %p108
      %p110 = scmp.ne.s32.totalorder %s99, %s102
      %p111 = scmp.eq.s32.totalorder %s28, 1
      %p112 = por %p110, %p111
      %p113 = scmp.ne.s32.totalorder %s102, %s103
      %p114 = scmp.eq.s32.totalorder %s28, 0
      %p115 = por %p113, %p114
      %p116 = scmp.ne.s32.totalorder %s102, %s103
      %p117 = scmp.eq.s32.totalorder %s29, 1
      %p118 = por %p116, %p117
      %p120 = scmp.ne.s32.totalorder %s103, %s119
      %p121 = scmp.eq.s32.totalorder %s29, 0
      %p122 = por %p120, %p121
      %s123 = ssub.s32 %s30, %s42
      %s124 = ssub.s32 %s31, %s38
      %s125 = sor.u32 %s123, %s124
      %p126 = scmp.eq.s32.totalorder %s125, 0
      %s128 = sadd.s32 %s127, 1
      %s129 = scalar_select %p126, %s127, %s128
      %p132 = pneg %p126
      %p133 = scmp.eq.s32.totalorder %s23, 1
      %p134 = por %p132, %p133
      %p135 = scmp.ne.s32.totalorder %s127, %s130
      %p136 = scmp.eq.s32.totalorder %s23, 0
      %p137 = por %p135, %p136
      %p138 = scmp.ne.s32.totalorder %s127, %s130
      %p139 = scmp.eq.s32.totalorder %s28, 1
      %p140 = por %p138, %p139
      %p141 = scmp.ne.s32.totalorder %s130, %s131
      %p142 = scmp.eq.s32.totalorder %s28, 0
      %p143 = por %p141, %p142
      %p144 = scmp.ne.s32.totalorder %s130, %s131
      %p145 = scmp.eq.s32.totalorder %s29, 1
      %p146 = por %p144, %p145
      %p148 = scmp.ne.s32.totalorder %s131, %s147
      %p149 = scmp.eq.s32.totalorder %s29, 0
      %p150 = por %p148, %p149
      %s151 = ssub.s32 %s30, %s42
      %s152 = ssub.s32 %s31, %s38
      %s153 = sor.u32 %s151, %s152
      %p154 = scmp.eq.s32.totalorder %s153, 0
      %s156 = sadd.s32 %s155, 1
      %s157 = scalar_select %p154, %s155, %s156
      %p160 = pneg %p154
      %p161 = scmp.eq.s32.totalorder %s23, 1
      %p162 = por %p160, %p161
      %p163 = scmp.ne.s32.totalorder %s155, %s158
      %p164 = scmp.eq.s32.totalorder %s23, 0
      %p165 = por %p163, %p164
      %p166 = scmp.ne.s32.totalorder %s155, %s158
      %p167 = scmp.eq.s32.totalorder %s28, 1
      %p168 = por %p166, %p167
      %p169 = scmp.ne.s32.totalorder %s158, %s159
      %p170 = scmp.eq.s32.totalorder %s28, 0
      %p171 = por %p169, %p170
      %p172 = scmp.ne.s32.totalorder %s158, %s159
      %p173 = scmp.eq.s32.totalorder %s29, 1
      %p174 = por %p172, %p173
      %p176 = scmp.ne.s32.totalorder %s159, %s175
      %p177 = scmp.eq.s32.totalorder %s29, 0
      %p178 = por %p176, %p177
      %p179 = scmp.le.s32.totalorder 1, %s23
      %p180 = scmp.lt.s32.totalorder %s23, 3
      %p181 = pnand %p179, %p180
      %p182 = pneg %p181
      // Predicated region
      $region9: #{tpu_custom_call.1} parent=5 // pred_check
        _
      $region10: #{tpu_custom_call.1} parent=5 // pred_check_branch
        %184 = sbr.rel (%p181) target = $region12
      $region11: #{tpu_custom_call.1} parent=5 // pred_region
        %s185 = ssub.s32 %s23, 1
      $region12: #{tpu_custom_call.1} parent=5 // pred_fallthru
        _
      %p186 = scmp.lt.s32.totalorder %s23, 2
      // Predicated region
      $region13: #{tpu_custom_call.1} parent=5 // pred_check
        %p187 = pneg %p186
      $region14: #{tpu_custom_call.1} parent=5 // pred_check_branch
        %189 = sbr.rel (%p187) target = $region16
      $region15: #{tpu_custom_call.1} parent=5 // pred_region
        // Predicated region
        $region17: #{tpu_custom_call.1} parent=15 // pred_check
          %p190 = pneg %p57
        $region18: #{tpu_custom_call.1} parent=15 // pred_check_branch
          %192 = sbr.rel (%p190) target = $region20
        $region19: #{tpu_custom_call.1} parent=15 // pred_region
          %s193 = sand.u32 %s47, 1
          %s194 = scalar_lea.sflag [#allocation3], %s193
          %s195 = sand.u32 %s47, 1
          %s196 = smul.addr %s195, 32
          %s197 = scalar_lea.vmem [#allocation2], %s196
          %s198 = smul.u32 8, %s31
          %s200 = ssub.s32 512, 512
          %201 = vsyncadd %s194, %s200
          %s202 = smul.addr %s30, 8
          %s203 = sadd.s32 %s198, %s202
          %s204 = smul.addr %s203, 64
          %s205 = scalar_lea.hbm %s0, %s204
          %s206 = sshll.u32 %s197, 4
          %s207 = int_to_ptr.vmem [resolvable:$true] %s206
          %212 = dma.hbm_to_vmem [thread:$0]  %s205, 512, %s207, %s194, 64, 64, 4
        $region20: #{tpu_custom_call.1} parent=15 // pred_fallthru
          _
        // Predicated region
        $region21: #{tpu_custom_call.1} parent=15 // pred_check
          %p213 = pneg %p83
        $region22: #{tpu_custom_call.1} parent=15 // pred_check_branch
          %215 = sbr.rel (%p213) target = $region24
        $region23: #{tpu_custom_call.1} parent=15 // pred_region
          %s216 = sand.u32 %s23, 1
          %s217 = scalar_lea.sflag [#allocation6], %s216
          %s218 = sand.u32 %s73, 1
          %s219 = smul.addr %s218, 32
          %s220 = scalar_lea.vmem [#allocation5], %s219
          %s222 = ssub.s32 512, 512
          %223 = vsyncadd %s217, %s222
          %s224 = smul.addr %s30, 8
          %s225 = smul.addr %s224, 64
          %s226 = scalar_lea.hbm %s1, %s225
          %s227 = sshll.u32 %s220, 4
          %s228 = int_to_ptr.vmem [resolvable:$true] %s227
          %233 = dma.hbm_to_vmem [thread:$0]  %s226, 512, %s228, %s217, 64, 64, 4
        $region24: #{tpu_custom_call.1} parent=15 // pred_fallthru
          _
        // Predicated region
        $region25: #{tpu_custom_call.1} parent=15 // pred_check
          %p234 = pneg %p109
        $region26: #{tpu_custom_call.1} parent=15 // pred_check_branch
          %236 = sbr.rel (%p234) target = $region28
        $region27: #{tpu_custom_call.1} parent=15 // pred_region
          %s237 = sand.u32 %s23, 1
          %s238 = scalar_lea.sflag [#allocation6], %s237
          %s239 = sand.u32 %s99, 1
          %s240 = smul.addr %s239, 32
          %s241 = scalar_lea.vmem [#allocation7], %s240
          %s243 = ssub.s32 512, 512
          %244 = vsyncadd %s238, %s243
          %s245 = smul.addr %s30, 8
          %s246 = smul.addr %s245, 64
          %s247 = scalar_lea.hbm %s2, %s246
          %s248 = sshll.u32 %s241, 4
          %s249 = int_to_ptr.vmem [resolvable:$true] %s248
          %254 = dma.hbm_to_vmem [thread:$0]  %s247, 512, %s249, %s238, 64, 64, 4
        $region28: #{tpu_custom_call.1} parent=15 // pred_fallthru
          _
      $region16: #{tpu_custom_call.1} parent=5 // pred_fallthru
        _
      %p255 = scmp.le.s32.totalorder 1, %s23
      %p256 = scmp.lt.s32.totalorder %s23, 3
      %p257 = pnand %p255, %p256
      %p258 = pneg %p257
      // Predicated region
      $region29: #{tpu_custom_call.1} parent=5 // pred_check
        _
      $region30: #{tpu_custom_call.1} parent=5 // pred_check_branch
        %260 = sbr.rel (%p257) target = $region32
      $region31: #{tpu_custom_call.1} parent=5 // pred_region
        %s261 = ssub.s32 %s23, 1
        %s262 = sand.u32 %s50, 1
        %s263 = scalar_lea.sflag [#allocation3], %s262
        %s264 = sand.u32 %s50, 1
        %s265 = smul.addr %s264, 32
        %s266 = scalar_lea.vmem [#allocation2], %s265
        // Predicated region
        $region33: #{tpu_custom_call.1} parent=31 // pred_check
          %p267 = pneg %p63
        $region34: #{tpu_custom_call.1} parent=31 // pred_check_branch
          %269 = sbr.rel (%p267) target = $region36
        $region35: #{tpu_custom_call.1} parent=31 // pred_region
          %270 = dma.done %s263, 512
        $region36: #{tpu_custom_call.1} parent=31 // pred_fallthru
          _
        %s271 = sand.u32 %s28, 1
        %s272 = scalar_lea.sflag [#allocation6], %s271
        %s273 = sand.u32 %s76, 1
        %s274 = smul.addr %s273, 32
        %s275 = scalar_lea.vmem [#allocation5], %s274
        // Predicated region
        $region37: #{tpu_custom_call.1} parent=31 // pred_check
          %p276 = pneg %p89
        $region38: #{tpu_custom_call.1} parent=31 // pred_check_branch
          %278 = sbr.rel (%p276) target = $region40
        $region39: #{tpu_custom_call.1} parent=31 // pred_region
          %279 = dma.done %s272, 512
        $region40: #{tpu_custom_call.1} parent=31 // pred_fallthru
          _
        %s280 = sand.u32 %s28, 1
        %s281 = scalar_lea.sflag [#allocation6], %s280
        %s282 = sand.u32 %s102, 1
        %s283 = smul.addr %s282, 32
        %s284 = scalar_lea.vmem [#allocation7], %s283
        // Predicated region
        $region41: #{tpu_custom_call.1} parent=31 // pred_check
          %p285 = pneg %p115
        $region42: #{tpu_custom_call.1} parent=31 // pred_check_branch
          %287 = sbr.rel (%p285) target = $region44
        $region43: #{tpu_custom_call.1} parent=31 // pred_region
          %288 = dma.done %s281, 512
        $region44: #{tpu_custom_call.1} parent=31 // pred_fallthru
          _
        %s289 = sand.u32 %s50, 1
        %s290 = scalar_lea.sflag [#allocation3], %s289
        %s291 = sand.u32 %s50, 1
        %s292 = smul.addr %s291, 32
        %s293 = scalar_lea.vmem [#allocation2], %s292
        %p294 = pneg %p63
        %p295 = pneg %p60
        %s296 = sand.u32 %s28, 1
        %s297 = scalar_lea.sflag [#allocation6], %s296
        %s298 = sand.u32 %s76, 1
        %s299 = smul.addr %s298, 32
        %s300 = scalar_lea.vmem [#allocation5], %s299
        %p301 = pneg %p89
        %p302 = pneg %p86
        %s303 = sand.u32 %s28, 1
        %s304 = scalar_lea.sflag [#allocation6], %s303
        %s305 = sand.u32 %s102, 1
        %s306 = smul.addr %s305, 32
        %s307 = scalar_lea.vmem [#allocation7], %s306
        %p308 = pneg %p115
        %p309 = pneg %p112
        %p310 = pneg %p143
        %p311 = pneg %p140
        %s312 = sand.u32 %s130, 1
        %s313 = scalar_lea.sflag [#allocation4], %s312
        %s314 = sand.u32 %s130, 1
        %s315 = smul.addr %s314, 32
        %s316 = scalar_lea.vmem [#allocation8], %s315
        %p317 = pneg %p171
        %p318 = pneg %p168
        %s319 = sand.u32 %s158, 1
        %s320 = scalar_lea.sflag [#allocation10], %s319
        %s321 = sand.u32 %s158, 1
        %s322 = smul.addr %s321, 32
        %s323 = scalar_lea.vmem [#allocation9], %s322
        %s324 = smul.u32 8, %s33
        %s325 = smul.u32 8, %s33
        %s326 = smul.u32 %s33, 8
        %v327 = vlaneseq
        %v328 = vshrl.u32 %v327, 7
        %v329 = vstv %s326
        %v330 = vadd.s32 %v329, %v328
        %v331 = vlaneseq
        %v332 = vand.u32 %v331, 127
        %vm333 = vcmp.gt.s32.totalorder %v332, %v330
        %v334 = vsel %vm333, -1e+09, 0.0
        %v335 = vld [vmem:[%s266] sm:$0x1]
        %v336 = vld [vmem:[%s266 + $0x4] sm:$0x1]
        %v337 = vld [vmem:[%s266 + $0x8] sm:$0x1]
        %v338 = vld [vmem:[%s266 + $0xc] sm:$0x1]
        %v339 = vld [vmem:[%s266 + $0x10] sm:$0x1]
        %v340 = vld [vmem:[%s266 + $0x14] sm:$0x1]
        %v341 = vld [vmem:[%s266 + $0x18] sm:$0x1]
        %v342 = vld [vmem:[%s266 + $0x1c] sm:$0x1]
        %v343 = vmul.f32 %v335, 0.35355338
        %v344 = vmul.f32 %v336, 0.35355338
        %v345 = vmul.f32 %v337, 0.35355338
        %v346 = vmul.f32 %v338, 0.35355338
        %v347 = vmul.f32 %v339, 0.35355338
        %v348 = vmul.f32 %v340, 0.35355338
        %v349 = vmul.f32 %v341, 0.35355338
        %v350 = vmul.f32 %v342, 0.35355338
        %v351 = vld [vmem:[%s275] sm:$0x1]
        %v352 = vld [vmem:[%s275 + $0x4] sm:$0x1]
        %v353 = vld [vmem:[%s275 + $0x8] sm:$0x1]
        %v354 = vld [vmem:[%s275 + $0xc] sm:$0x1]
        %v355 = vld [vmem:[%s275 + $0x10] sm:$0x1]
        %v356 = vld [vmem:[%s275 + $0x14] sm:$0x1]
        %v357 = vld [vmem:[%s275 + $0x18] sm:$0x1]
        %v358 = vld [vmem:[%s275 + $0x1c] sm:$0x1]
        %v359 = vld [vmem:[%s284] sm:$0x1]
        %v360 = vld [vmem:[%s284 + $0x4] sm:$0x1]
        %v361 = vld [vmem:[%s284 + $0x8] sm:$0x1]
        %v362 = vld [vmem:[%s284 + $0xc] sm:$0x1]
        %v363 = vld [vmem:[%s284 + $0x10] sm:$0x1]
        %v364 = vld [vmem:[%s284 + $0x14] sm:$0x1]
        %v365 = vld [vmem:[%s284 + $0x18] sm:$0x1]
        %v366 = vld [vmem:[%s284 + $0x1c] sm:$0x1]
        %v375 = vrot.slane %v344, 7
        %vm376 = vcmask 1041409
        %v377 = vsel %vm376, %v375, %v343
        %v378 = vrot.slane %v345, 6
        %vm379 = vcmask 1042434
        %v380 = vsel %vm379, %v378, %v377
        %v381 = vrot.slane %v346, 5
        %vm382 = vcmask 1043459
        %v383 = vsel %vm382, %v381, %v380
        %v384 = vrot.slane %v347, 4
        %vm385 = vcmask 1044484
        %v386 = vsel %vm385, %v384, %v383
        %v387 = vrot.slane %v348, 3
        %vm388 = vcmask 1045509
        %v389 = vsel %vm388, %v387, %v386
        %v390 = vrot.slane %v349, 2
        %vm391 = vcmask 1046534
        %v392 = vsel %vm391, %v390, %v389
        %v393 = vrot.slane %v350, 1
        %vm394 = vcmask 1047559
        %v395 = vsel %vm394, %v393, %v392
        %v404 = vrot.slane %v352, 7
        %v405 = vsel %vm376, %v404, %v351
        %v406 = vrot.slane %v353, 6
        %v407 = vsel %vm379, %v406, %v405
        %v408 = vrot.slane %v354, 5
        %v409 = vsel %vm382, %v408, %v407
        %v410 = vrot.slane %v355, 4
        %v411 = vsel %vm385, %v410, %v409
        %v412 = vrot.slane %v356, 3
        %v413 = vsel %vm388, %v412, %v411
        %v414 = vrot.slane %v357, 2
        %v415 = vsel %vm391, %v414, %v413
        %v416 = vrot.slane %v358, 1
        %v417 = vsel %vm394, %v416, %v415
        %vm418 = vcmask 64512
        %v419 = vsel %vm418, %v395, 0
        %v421 = vsel %vm418, %v417, 0
        %423 = vmatprep.subr.mxu0 0.0
        %424 = vmatpush1.xpose.msra.mxu0 %v421
        %425 = vmatprep.subr.mxu0 0.0
        %426 = vmatpush1.xpose.msra.mxu0 0.0
        %427 = vmatprep.subr.mxu0 0.0
        %428 = vmatpush1.xpose.msra.mxu0 0.0
        %429 = vmatprep.subr.mxu0 0.0
        %430 = vmatpush1.xpose.msra.mxu0 0.0
        %431 = vmatprep.subr.mxu0 0.0
        %432 = vmatpush1.xpose.msra.mxu0 0.0
        %433 = vmatprep.subr.mxu0 0.0
        %434 = vmatpush1.xpose.msra.mxu0 0.0
        %435 = vmatprep.subr.mxu0 0.0
        %436 = vmatpush1.xpose.msra.mxu0 0.0
        %437 = vmatprep.subr.mxu0 0.0
        %438 = vmatpush1.xpose.msra.mxu0 0.0
        %439 = vmatprep.subr.mxu0 0.0
        %440 = vmatpush1.xpose.msra.mxu0 0.0
        %441 = vmatprep.subr.mxu0 0.0
        %442 = vmatpush1.xpose.msra.mxu0 0.0
        %443 = vmatprep.subr.mxu0 0.0
        %444 = vmatpush1.xpose.msra.mxu0 0.0
        %445 = vmatprep.subr.mxu0 0.0
        %446 = vmatpush1.xpose.msra.mxu0 0.0
        %447 = vmatprep.subr.mxu0 0.0
        %448 = vmatpush1.xpose.msra.mxu0 0.0
        %449 = vmatprep.subr.mxu0 0.0
        %450 = vmatpush1.xpose.msra.mxu0 0.0
        %451 = vmatprep.subr.mxu0 0.0
        %452 = vmatpush1.xpose.msra.mxu0 0.0
        %453 = vmatprep.subr.mxu0 0.0
        %454 = vmatpush1.xpose.msra.mxu0 0.0
        %455 = vmatprep.subr.mxu0 0.0
        %456 = vmatpush1.xpose.msra.mxu0 0.0
        %457 = vmatprep.subr.mxu0 0.0
        %458 = vmatpush1.xpose.msra.mxu0 0.0
        %459 = vmatprep.subr.mxu0 0.0
        %460 = vmatpush1.xpose.msra.mxu0 0.0
        %461 = vmatprep.subr.mxu0 0.0
        %462 = vmatpush1.xpose.msra.mxu0 0.0
        %463 = vmatprep.subr.mxu0 0.0
        %464 = vmatpush1.xpose.msra.mxu0 0.0
        %465 = vmatprep.subr.mxu0 0.0
        %466 = vmatpush1.xpose.msra.mxu0 0.0
        %467 = vmatprep.subr.mxu0 0.0
        %468 = vmatpush1.xpose.msra.mxu0 0.0
        %469 = vmatprep.subr.mxu0 0.0
        %470 = vmatpush1.xpose.msra.mxu0 0.0
        %471 = vmatprep.subr.mxu0 0.0
        %472 = vmatpush1.xpose.msra.mxu0 0.0
        %473 = vmatprep.subr.mxu0 0.0
        %474 = vmatpush1.xpose.msra.mxu0 0.0
        %475 = vmatprep.subr.mxu0 0.0
        %476 = vmatpush1.xpose.msra.mxu0 0.0
        %477 = vmatprep.subr.mxu0 0.0
        %478 = vmatpush1.xpose.msra.mxu0 0.0
        %479 = vmatprep.subr.mxu0 0.0
        %480 = vmatpush1.xpose.msra.mxu0 0.0
        %481 = vmatprep.subr.mxu0 0.0
        %482 = vmatpush1.xpose.msra.mxu0 0.0
        %483 = vmatprep.subr.mxu0 0.0
        %484 = vmatpush1.xpose.msra.mxu0 0.0
        %485 = vmatprep.subr.mxu0 0.0
        %486 = vmatpush1.xpose.msra.mxu0 0.0
        %487 = vmatprep.mubr.f32.mxu0 0.0
        %488 = vmatmul.mubr.f32.gmra.mrb[0].mxu0 %v419
        %v489 = vpop.f32.mrb[0].mxu0
        %v490 = vadd.f32 %v334, %v489
        %v491 = vpop.f32.mrb[0].mxu0
        %492 = vdwg.mxu0
        %v493 = vsel %vm418, %v490, -inf
        %494 = vmax.xlane.f32.xlu0 %v493
        %v495 = vpop.xlane.xlu0 %494
        %v496 = vsub.f32 %v490, %v495
        %v497 = vmul.f32 %v496, 1.442695
        %v498 = vpow.pop %v497
        %v499 = vsel %vm418, %v498, 0.0
        %500 = vadd.xlane.f32.xlu0 %v499
        %v501 = vpop.xlane.xlu0 %500
        %v502 = vrcp.pop %v501
        %v503 = vmul.f32 %v498, %v502
        %504 = vst.msk [vmem:[%s323] sm:$0xff] %vm418, %v503
        %v513 = vrot.slane %v360, 7
        %v514 = vsel %vm376, %v513, %v359
        %v515 = vrot.slane %v361, 6
        %v516 = vsel %vm379, %v515, %v514
        %v517 = vrot.slane %v362, 5
        %v518 = vsel %vm382, %v517, %v516
        %v519 = vrot.slane %v363, 4
        %v520 = vsel %vm385, %v519, %v518
        %v521 = vrot.slane %v364, 3
        %v522 = vsel %vm388, %v521, %v520
        %v523 = vrot.slane %v365, 2
        %v524 = vsel %vm391, %v523, %v522
        %v525 = vrot.slane %v366, 1
        %v526 = vsel %vm394, %v525, %v524
        %v529 = vsel %vm418, %v503, 0
        %531 = vmatprep.subr.mxu0 0.0
        %532 = vmatpush1.msra.mxu0 %v526
        %533 = vmatprep.subr.mxu0 0.0
        %534 = vmatpush1.msra.mxu0 0.0
        %535 = vmatprep.subr.mxu0 0.0
        %536 = vmatpush1.msra.mxu0 0.0
        %537 = vmatprep.subr.mxu0 0.0
        %538 = vmatpush1.msra.mxu0 0.0
        %539 = vmatprep.subr.mxu0 0.0
        %540 = vmatpush1.msra.mxu0 0.0
        %541 = vmatprep.subr.mxu0 0.0
        %542 = vmatpush1.msra.mxu0 0.0
        %543 = vmatprep.subr.mxu0 0.0
        %544 = vmatpush1.msra.mxu0 0.0
        %545 = vmatprep.subr.mxu0 0.0
        %546 = vmatpush1.msra.mxu0 0.0
        %547 = vmatprep.subr.mxu0 0.0
        %548 = vmatpush1.msra.mxu0 0.0
        %549 = vmatprep.subr.mxu0 0.0
        %550 = vmatpush1.msra.mxu0 0.0
        %551 = vmatprep.subr.mxu0 0.0
        %552 = vmatpush1.msra.mxu0 0.0
        %553 = vmatprep.subr.mxu0 0.0
        %554 = vmatpush1.msra.mxu0 0.0
        %555 = vmatprep.subr.mxu0 0.0
        %556 = vmatpush1.msra.mxu0 0.0
        %557 = vmatprep.subr.mxu0 0.0
        %558 = vmatpush1.msra.mxu0 0.0
        %559 = vmatprep.subr.mxu0 0.0
        %560 = vmatpush1.msra.mxu0 0.0
        %561 = vmatprep.subr.mxu0 0.0
        %562 = vmatpush1.msra.mxu0 0.0
        %563 = vmatprep.subr.mxu0 0.0
        %564 = vmatpush1.msra.mxu0 0.0
        %565 = vmatprep.subr.mxu0 0.0
        %566 = vmatpush1.msra.mxu0 0.0
        %567 = vmatprep.subr.mxu0 0.0
        %568 = vmatpush1.msra.mxu0 0.0
        %569 = vmatprep.subr.mxu0 0.0
        %570 = vmatpush1.msra.mxu0 0.0
        %571 = vmatprep.subr.mxu0 0.0
        %572 = vmatpush1.msra.mxu0 0.0
        %573 = vmatprep.subr.mxu0 0.0
        %574 = vmatpush1.msra.mxu0 0.0
        %575 = vmatprep.subr.mxu0 0.0
        %576 = vmatpush1.msra.mxu0 0.0
        %577 = vmatprep.subr.mxu0 0.0
        %578 = vmatpush1.msra.mxu0 0.0
        %579 = vmatprep.subr.mxu0 0.0
        %580 = vmatpush1.msra.mxu0 0.0
        %581 = vmatprep.subr.mxu0 0.0
        %582 = vmatpush1.msra.mxu0 0.0
        %583 = vmatprep.subr.mxu0 0.0
        %584 = vmatpush1.msra.mxu0 0.0
        %585 = vmatprep.subr.mxu0 0.0
        %586 = vmatpush1.msra.mxu0 0.0
        %587 = vmatprep.subr.mxu0 0.0
        %588 = vmatpush1.msra.mxu0 0.0
        %589 = vmatprep.subr.mxu0 0.0
        %590 = vmatpush1.msra.mxu0 0.0
        %591 = vmatprep.subr.mxu0 0.0
        %592 = vmatpush1.msra.mxu0 0.0
        %593 = vmatprep.subr.mxu0 0.0
        %594 = vmatpush1.msra.mxu0 0.0
        %595 = vmatprep.mubr.f32.mxu0 0.0
        %596 = vmatmul.mubr.f32.gmra.mrb[0].mxu0 %v529
        %v597 = vpop.f32.mrb[0].mxu0
        %v598 = vadd.f32 0.0, %v597
        %v599 = vpop.f32.mrb[0].mxu0
        %600 = vdwg.mxu0
        %v602 = vcombine.high %v598, %v598
        %v604 = vunpack.c.l.s4 1966171168
        %v605 = vunpack.c.0.s8 %v604
        %v606 = vlaneseq
        %v607 = vshrl.u32 %v606, 7
        %v608 = vsub.s32 %v605, %v607
        %v609 = vrot.slane %v598, %v608
        %v611 = vunpack.c.l.s4 1966171168
        %v612 = vunpack.c.0.s8 %v611
        %v613 = vlaneseq
        %v614 = vshrl.u32 %v613, 7
        %v615 = vsub.s32 %v612, %v614
        %v616 = vrot.slane %v602, %v615
        %v617 = vcombine.high %v609, %v609
        %v618 = vcombine.high %v616, %v616
        %v620 = vunpack.c.l.s4 1966171168
        %v621 = vunpack.c.0.s8 %v620
        %v622 = vlaneseq
        %v623 = vshrl.u32 %v622, 7
        %v624 = vsub.s32 %v621, %v623
        %v625 = vrot.slane %v609, %v624
        %v627 = vunpack.c.l.s4 1966171168
        %v628 = vunpack.c.0.s8 %v627
        %v629 = vlaneseq
        %v630 = vshrl.u32 %v629, 7
        %v631 = vsub.s32 %v628, %v630
        %v632 = vrot.slane %v616, %v631
        %v634 = vunpack.c.l.s4 1966171168
        %v635 = vunpack.c.0.s8 %v634
        %v636 = vlaneseq
        %v637 = vshrl.u32 %v636, 7
        %v638 = vsub.s32 %v635, %v637
        %v639 = vrot.slane %v617, %v638
        %v641 = vunpack.c.l.s4 1966171168
        %v642 = vunpack.c.0.s8 %v641
        %v643 = vlaneseq
        %v644 = vshrl.u32 %v643, 7
        %v645 = vsub.s32 %v642, %v644
        %v646 = vrot.slane %v618, %v645
        %v647 = vcombine.high %v625, %v625
        %v648 = vcombine.high %v632, %v632
        %v649 = vcombine.high %v639, %v639
        %v650 = vcombine.high %v646, %v646
        %vm659 = vcmask 57344
        %660 = vst.msk [vmem:[%s316] sm:$0x1] %vm659, %v625
        %661 = vst.msk [vmem:[%s316 + $0x4] sm:$0x1] %vm659, %v639
        %662 = vst.msk [vmem:[%s316 + $0x8] sm:$0x1] %vm659, %v647
        %663 = vst.msk [vmem:[%s316 + $0xc] sm:$0x1] %vm659, %v649
        %664 = vst.msk [vmem:[%s316 + $0x10] sm:$0x1] %vm659, %v632
        %665 = vst.msk [vmem:[%s316 + $0x14] sm:$0x1] %vm659, %v646
        %666 = vst.msk [vmem:[%s316 + $0x18] sm:$0x1] %vm659, %v648
        %667 = vst.msk [vmem:[%s316 + $0x1c] sm:$0x1] %vm659, %v650
        %v668 = vld [vmem:[%s266 + $0x1] sm:$0x1]
        %v669 = vld [vmem:[%s266 + $0x5] sm:$0x1]
        %v670 = vld [vmem:[%s266 + $0x9] sm:$0x1]
        %v671 = vld [vmem:[%s266 + $0xd] sm:$0x1]
        %v672 = vld [vmem:[%s266 + $0x11] sm:$0x1]
        %v673 = vld [vmem:[%s266 + $0x15] sm:$0x1]
        %v674 = vld [vmem:[%s266 + $0x19] sm:$0x1]
        %v675 = vld [vmem:[%s266 + $0x1d] sm:$0x1]
        %v676 = vmul.f32 %v668, 0.35355338
        %v677 = vmul.f32 %v669, 0.35355338
        %v678 = vmul.f32 %v670, 0.35355338
        %v679 = vmul.f32 %v671, 0.35355338
        %v680 = vmul.f32 %v672, 0.35355338
        %v681 = vmul.f32 %v673, 0.35355338
        %v682 = vmul.f32 %v674, 0.35355338
        %v683 = vmul.f32 %v675, 0.35355338
        %v684 = vld [vmem:[%s275 + $0x1] sm:$0x1]
        %v685 = vld [vmem:[%s275 + $0x5] sm:$0x1]
        %v686 = vld [vmem:[%s275 + $0x9] sm:$0x1]
        %v687 = vld [vmem:[%s275 + $0xd] sm:$0x1]
        %v688 = vld [vmem:[%s275 + $0x11] sm:$0x1]
        %v689 = vld [vmem:[%s275 + $0x15] sm:$0x1]
        %v690 = vld [vmem:[%s275 + $0x19] sm:$0x1]
        %v691 = vld [vmem:[%s275 + $0x1d] sm:$0x1]
        %v692 = vld [vmem:[%s284 + $0x1] sm:$0x1]
        %v693 = vld [vmem:[%s284 + $0x5] sm:$0x1]
        %v694 = vld [vmem:[%s284 + $0x9] sm:$0x1]
        %v695 = vld [vmem:[%s284 + $0xd] sm:$0x1]
        %v696 = vld [vmem:[%s284 + $0x11] sm:$0x1]
        %v697 = vld [vmem:[%s284 + $0x15] sm:$0x1]
        %v698 = vld [vmem:[%s284 + $0x19] sm:$0x1]
        %v699 = vld [vmem:[%s284 + $0x1d] sm:$0x1]
        %v708 = vrot.slane %v677, 7
        %v709 = vsel %vm376, %v708, %v676
        %v710 = vrot.slane %v678, 6
        %v711 = vsel %vm379, %v710, %v709
        %v712 = vrot.slane %v679, 5
        %v713 = vsel %vm382, %v712, %v711
        %v714 = vrot.slane %v680, 4
        %v715 = vsel %vm385, %v714, %v713
        %v716 = vrot.slane %v681, 3
        %v717 = vsel %vm388, %v716, %v715
        %v718 = vrot.slane %v682, 2
        %v719 = vsel %vm391, %v718, %v717
        %v720 = vrot.slane %v683, 1
        %v721 = vsel %vm394, %v720, %v719
        %v730 = vrot.slane %v685, 7
        %v731 = vsel %vm376, %v730, %v684
        %v732 = vrot.slane %v686, 6
        %v733 = vsel %vm379, %v732, %v731
        %v734 = vrot.slane %v687, 5
        %v735 = vsel %vm382, %v734, %v733
        %v736 = vrot.slane %v688, 4
        %v737 = vsel %vm385, %v736, %v735
        %v738 = vrot.slane %v689, 3
        %v739 = vsel %vm388, %v738, %v737
        %v740 = vrot.slane %v690, 2
        %v741 = vsel %vm391, %v740, %v739
        %v742 = vrot.slane %v691, 1
        %v743 = vsel %vm394, %v742, %v741
        %v744 = vsel %vm418, %v721, 0
        %v746 = vsel %vm418, %v743, 0
        %748 = vmatprep.subr.mxu0 0.0
        %749 = vmatpush1.xpose.msra.mxu0 %v746
        %750 = vmatprep.subr.mxu0 0.0
        %751 = vmatpush1.xpose.msra.mxu0 0.0
        %752 = vmatprep.subr.mxu0 0.0
        %753 = vmatpush1.xpose.msra.mxu0 0.0
        %754 = vmatprep.subr.mxu0 0.0
        %755 = vmatpush1.xpose.msra.mxu0 0.0
        %756 = vmatprep.subr.mxu0 0.0
        %757 = vmatpush1.xpose.msra.mxu0 0.0
        %758 = vmatprep.subr.mxu0 0.0
        %759 = vmatpush1.xpose.msra.mxu0 0.0
        %760 = vmatprep.subr.mxu0 0.0
        %761 = vmatpush1.xpose.msra.mxu0 0.0
        %762 = vmatprep.subr.mxu0 0.0
        %763 = vmatpush1.xpose.msra.mxu0 0.0
        %764 = vmatprep.subr.mxu0 0.0
        %765 = vmatpush1.xpose.msra.mxu0 0.0
        %766 = vmatprep.subr.mxu0 0.0
        %767 = vmatpush1.xpose.msra.mxu0 0.0
        %768 = vmatprep.subr.mxu0 0.0
        %769 = vmatpush1.xpose.msra.mxu0 0.0
        %770 = vmatprep.subr.mxu0 0.0
        %771 = vmatpush1.xpose.msra.mxu0 0.0
        %772 = vmatprep.subr.mxu0 0.0
        %773 = vmatpush1.xpose.msra.mxu0 0.0
        %774 = vmatprep.subr.mxu0 0.0
        %775 = vmatpush1.xpose.msra.mxu0 0.0
        %776 = vmatprep.subr.mxu0 0.0
        %777 = vmatpush1.xpose.msra.mxu0 0.0
        %778 = vmatprep.subr.mxu0 0.0
        %779 = vmatpush1.xpose.msra.mxu0 0.0
        %780 = vmatprep.subr.mxu0 0.0
        %781 = vmatpush1.xpose.msra.mxu0 0.0
        %782 = vmatprep.subr.mxu0 0.0
        %783 = vmatpush1.xpose.msra.mxu0 0.0
        %784 = vmatprep.subr.mxu0 0.0
        %785 = vmatpush1.xpose.msra.mxu0 0.0
        %786 = vmatprep.subr.mxu0 0.0
        %787 = vmatpush1.xpose.msra.mxu0 0.0
        %788 = vmatprep.subr.mxu0 0.0
        %789 = vmatpush1.xpose.msra.mxu0 0.0
        %790 = vmatprep.subr.mxu0 0.0
        %791 = vmatpush1.xpose.msra.mxu0 0.0
        %792 = vmatprep.subr.mxu0 0.0
        %793 = vmatpush1.xpose.msra.mxu0 0.0
        %794 = vmatprep.subr.mxu0 0.0
        %795 = vmatpush1.xpose.msra.mxu0 0.0
        %796 = vmatprep.subr.mxu0 0.0
        %797 = vmatpush1.xpose.msra.mxu0 0.0
        %798 = vmatprep.subr.mxu0 0.0
        %799 = vmatpush1.xpose.msra.mxu0 0.0
        %800 = vmatprep.subr.mxu0 0.0
        %801 = vmatpush1.xpose.msra.mxu0 0.0
        %802 = vmatprep.subr.mxu0 0.0
        %803 = vmatpush1.xpose.msra.mxu0 0.0
        %804 = vmatprep.subr.mxu0 0.0
        %805 = vmatpush1.xpose.msra.mxu0 0.0
        %806 = vmatprep.subr.mxu0 0.0
        %807 = vmatpush1.xpose.msra.mxu0 0.0
        %808 = vmatprep.subr.mxu0 0.0
        %809 = vmatpush1.xpose.msra.mxu0 0.0
        %810 = vmatprep.subr.mxu0 0.0
        %811 = vmatpush1.xpose.msra.mxu0 0.0
        %812 = vmatprep.mubr.f32.mxu0 0.0
        %813 = vmatmul.mubr.f32.gmra.mrb[0].mxu0 %v744
        %v814 = vpop.f32.mrb[0].mxu0
        %v815 = vadd.f32 %v334, %v814
        %v816 = vpop.f32.mrb[0].mxu0
        %817 = vdwg.mxu0
        %v818 = vsel %vm418, %v815, -inf
        %819 = vmax.xlane.f32.xlu0 %v818
        %v820 = vpop.xlane.xlu0 %819
        %v821 = vsub.f32 %v815, %v820
        %v822 = vmul.f32 %v821, 1.442695
        %v823 = vpow.pop %v822
        %v824 = vsel %vm418, %v823, 0.0
        %825 = vadd.xlane.f32.xlu0 %v824
        %v826 = vpop.xlane.xlu0 %825
        %v827 = vrcp.pop %v826
        %v828 = vmul.f32 %v823, %v827
        %s829 = scalar_lea.vmem %s323, 8 [#allocation9]
        %830 = vst.msk [vmem:[%s829] sm:$0xff] %vm418, %v828
        %v839 = vrot.slane %v693, 7
        %v840 = vsel %vm376, %v839, %v692
        %v841 = vrot.slane %v694, 6
        %v842 = vsel %vm379, %v841, %v840
        %v843 = vrot.slane %v695, 5
        %v844 = vsel %vm382, %v843, %v842
        %v845 = vrot.slane %v696, 4
        %v846 = vsel %vm385, %v845, %v844
        %v847 = vrot.slane %v697, 3
        %v848 = vsel %vm388, %v847, %v846
        %v849 = vrot.slane %v698, 2
        %v850 = vsel %vm391, %v849, %v848
        %v851 = vrot.slane %v699, 1
        %v852 = vsel %vm394, %v851, %v850
        %v855 = vsel %vm418, %v828, 0
        %857 = vmatprep.subr.mxu0 0.0
        %858 = vmatpush1.msra.mxu0 %v852
        %859 = vmatprep.subr.mxu0 0.0
        %860 = vmatpush1.msra.mxu0 0.0
        %861 = vmatprep.subr.mxu0 0.0
        %862 = vmatpush1.msra.mxu0 0.0
        %863 = vmatprep.subr.mxu0 0.0
        %864 = vmatpush1.msra.mxu0 0.0
        %865 = vmatprep.subr.mxu0 0.0
        %866 = vmatpush1.msra.mxu0 0.0
        %867 = vmatprep.subr.mxu0 0.0
        %868 = vmatpush1.msra.mxu0 0.0
        %869 = vmatprep.subr.mxu0 0.0
        %870 = vmatpush1.msra.mxu0 0.0
        %871 = vmatprep.subr.mxu0 0.0
        %872 = vmatpush1.msra.mxu0 0.0
        %873 = vmatprep.subr.mxu0 0.0
        %874 = vmatpush1.msra.mxu0 0.0
        %875 = vmatprep.subr.mxu0 0.0
        %876 = vmatpush1.msra.mxu0 0.0
        %877 = vmatprep.subr.mxu0 0.0
        %878 = vmatpush1.msra.mxu0 0.0
        %879 = vmatprep.subr.mxu0 0.0
        %880 = vmatpush1.msra.mxu0 0.0
        %881 = vmatprep.subr.mxu0 0.0
        %882 = vmatpush1.msra.mxu0 0.0
        %883 = vmatprep.subr.mxu0 0.0
        %884 = vmatpush1.msra.mxu0 0.0
        %885 = vmatprep.subr.mxu0 0.0
        %886 = vmatpush1.msra.mxu0 0.0
        %887 = vmatprep.subr.mxu0 0.0
        %888 = vmatpush1.msra.mxu0 0.0
        %889 = vmatprep.subr.mxu0 0.0
        %890 = vmatpush1.msra.mxu0 0.0
        %891 = vmatprep.subr.mxu0 0.0
        %892 = vmatpush1.msra.mxu0 0.0
        %893 = vmatprep.subr.mxu0 0.0
        %894 = vmatpush1.msra.mxu0 0.0
        %895 = vmatprep.subr.mxu0 0.0
        %896 = vmatpush1.msra.mxu0 0.0
        %897 = vmatprep.subr.mxu0 0.0
        %898 = vmatpush1.msra.mxu0 0.0
        %899 = vmatprep.subr.mxu0 0.0
        %900 = vmatpush1.msra.mxu0 0.0
        %901 = vmatprep.subr.mxu0 0.0
        %902 = vmatpush1.msra.mxu0 0.0
        %903 = vmatprep.subr.mxu0 0.0
        %904 = vmatpush1.msra.mxu0 0.0
        %905 = vmatprep.subr.mxu0 0.0
        %906 = vmatpush1.msra.mxu0 0.0
        %907 = vmatprep.subr.mxu0 0.0
        %908 = vmatpush1.msra.mxu0 0.0
        %909 = vmatprep.subr.mxu0 0.0
        %910 = vmatpush1.msra.mxu0 0.0
        %911 = vmatprep.subr.mxu0 0.0
        %912 = vmatpush1.msra.mxu0 0.0
        %913 = vmatprep.subr.mxu0 0.0
        %914 = vmatpush1.msra.mxu0 0.0
        %915 = vmatprep.subr.mxu0 0.0
        %916 = vmatpush1.msra.mxu0 0.0
        %917 = vmatprep.subr.mxu0 0.0
        %918 = vmatpush1.msra.mxu0 0.0
        %919 = vmatprep.subr.mxu0 0.0
        %920 = vmatpush1.msra.mxu0 0.0
        %921 = vmatprep.mubr.f32.mxu0 0.0
        %922 = vmatmul.mubr.f32.gmra.mrb[0].mxu0 %v855
        %v923 = vpop.f32.mrb[0].mxu0
        %v924 = vadd.f32 0.0, %v923
        %v925 = vpop.f32.mrb[0].mxu0
        %926 = vdwg.mxu0
        %v928 = vcombine.high %v924, %v924
        %v930 = vunpack.c.l.s4 1966171168
        %v931 = vunpack.c.0.s8 %v930
        %v932 = vlaneseq
        %v933 = vshrl.u32 %v932, 7
        %v934 = vsub.s32 %v931, %v933
        %v935 = vrot.slane %v924, %v934
        %v937 = vunpack.c.l.s4 1966171168
        %v938 = vunpack.c.0.s8 %v937
        %v939 = vlaneseq
        %v940 = vshrl.u32 %v939, 7
        %v941 = vsub.s32 %v938, %v940
        %v942 = vrot.slane %v928, %v941
        %v943 = vcombine.high %v935, %v935
        %v944 = vcombine.high %v942, %v942
        %v946 = vunpack.c.l.s4 1966171168
        %v947 = vunpack.c.0.s8 %v946
        %v948 = vlaneseq
        %v949 = vshrl.u32 %v948, 7
        %v950 = vsub.s32 %v947, %v949
        %v951 = vrot.slane %v935, %v950
        %v953 = vunpack.c.l.s4 1966171168
        %v954 = vunpack.c.0.s8 %v953
        %v955 = vlaneseq
        %v956 = vshrl.u32 %v955, 7
        %v957 = vsub.s32 %v954, %v956
        %v958 = vrot.slane %v942, %v957
        %v960 = vunpack.c.l.s4 1966171168
        %v961 = vunpack.c.0.s8 %v960
        %v962 = vlaneseq
        %v963 = vshrl.u32 %v962, 7
        %v964 = vsub.s32 %v961, %v963
        %v965 = vrot.slane %v943, %v964
        %v967 = vunpack.c.l.s4 1966171168
        %v968 = vunpack.c.0.s8 %v967
        %v969 = vlaneseq
        %v970 = vshrl.u32 %v969, 7
        %v971 = vsub.s32 %v968, %v970
        %v972 = vrot.slane %v944, %v971
        %v973 = vcombine.high %v951, %v951
        %v974 = vcombine.high %v958, %v958
        %v975 = vcombine.high %v965, %v965
        %v976 = vcombine.high %v972, %v972
        %985 = vst.msk [vmem:[%s316 + $0x1] sm:$0x1] %vm659, %v951
        %986 = vst.msk [vmem:[%s316 + $0x5] sm:$0x1] %vm659, %v965
        %987 = vst.msk [vmem:[%s316 + $0x9] sm:$0x1] %vm659, %v973
        %988 = vst.msk [vmem:[%s316 + $0xd] sm:$0x1] %vm659, %v975
        %989 = vst.msk [vmem:[%s316 + $0x11] sm:$0x1] %vm659, %v958
        %990 = vst.msk [vmem:[%s316 + $0x15] sm:$0x1] %vm659, %v972
        %991 = vst.msk [vmem:[%s316 + $0x19] sm:$0x1] %vm659, %v974
        %992 = vst.msk [vmem:[%s316 + $0x1d] sm:$0x1] %vm659, %v976
        %v993 = vld [vmem:[%s266 + $0x2] sm:$0x1]
        %v994 = vld [vmem:[%s266 + $0x6] sm:$0x1]
        %v995 = vld [vmem:[%s266 + $0xa] sm:$0x1]
        %v996 = vld [vmem:[%s266 + $0xe] sm:$0x1]
        %v997 = vld [vmem:[%s266 + $0x12] sm:$0x1]
        %v998 = vld [vmem:[%s266 + $0x16] sm:$0x1]
        %v999 = vld [vmem:[%s266 + $0x1a] sm:$0x1]
        %v1000 = vld [vmem:[%s266 + $0x1e] sm:$0x1]
        %v1001 = vmul.f32 %v993, 0.35355338
        %v1002 = vmul.f32 %v994, 0.35355338
        %v1003 = vmul.f32 %v995, 0.35355338
        %v1004 = vmul.f32 %v996, 0.35355338
        %v1005 = vmul.f32 %v997, 0.35355338
        %v1006 = vmul.f32 %v998, 0.35355338
        %v1007 = vmul.f32 %v999, 0.35355338
        %v1008 = vmul.f32 %v1000, 0.35355338
        %v1009 = vld [vmem:[%s275 + $0x2] sm:$0x1]
        %v1010 = vld [vmem:[%s275 + $0x6] sm:$0x1]
        %v1011 = vld [vmem:[%s275 + $0xa] sm:$0x1]
        %v1012 = vld [vmem:[%s275 + $0xe] sm:$0x1]
        %v1013 = vld [vmem:[%s275 + $0x12] sm:$0x1]
        %v1014 = vld [vmem:[%s275 + $0x16] sm:$0x1]
        %v1015 = vld [vmem:[%s275 + $0x1a] sm:$0x1]
        %v1016 = vld [vmem:[%s275 + $0x1e] sm:$0x1]
        %v1017 = vld [vmem:[%s284 + $0x2] sm:$0x1]
        %v1018 = vld [vmem:[%s284 + $0x6] sm:$0x1]
        %v1019 = vld [vmem:[%s284 + $0xa] sm:$0x1]
        %v1020 = vld [vmem:[%s284 + $0xe] sm:$0x1]
        %v1021 = vld [vmem:[%s284 + $0x12] sm:$0x1]
        %v1022 = vld [vmem:[%s284 + $0x16] sm:$0x1]
        %v1023 = vld [vmem:[%s284 + $0x1a] sm:$0x1]
        %v1024 = vld [vmem:[%s284 + $0x1e] sm:$0x1]
        %v1033 = vrot.slane %v1002, 7
        %v1034 = vsel %vm376, %v1033, %v1001
        %v1035 = vrot.slane %v1003, 6
        %v1036 = vsel %vm379, %v1035, %v1034
        %v1037 = vrot.slane %v1004, 5
        %v1038 = vsel %vm382, %v1037, %v1036
        %v1039 = vrot.slane %v1005, 4
        %v1040 = vsel %vm385, %v1039, %v1038
        %v1041 = vrot.slane %v1006, 3
        %v1042 = vsel %vm388, %v1041, %v1040
        %v1043 = vrot.slane %v1007, 2
        %v1044 = vsel %vm391, %v1043, %v1042
        %v1045 = vrot.slane %v1008, 1
        %v1046 = vsel %vm394, %v1045, %v1044
        %v1055 = vrot.slane %v1010, 7
        %v1056 = vsel %vm376, %v1055, %v1009
        %v1057 = vrot.slane %v1011, 6
        %v1058 = vsel %vm379, %v1057, %v1056
        %v1059 = vrot.slane %v1012, 5
        %v1060 = vsel %vm382, %v1059, %v1058
        %v1061 = vrot.slane %v1013, 4
        %v1062 = vsel %vm385, %v1061, %v1060
        %v1063 = vrot.slane %v1014, 3
        %v1064 = vsel %vm388, %v1063, %v1062
        %v1065 = vrot.slane %v1015, 2
        %v1066 = vsel %vm391, %v1065, %v1064
        %v1067 = vrot.slane %v1016, 1
        %v1068 = vsel %vm394, %v1067, %v1066
        %v1069 = vsel %vm418, %v1046, 0
        %v1071 = vsel %vm418, %v1068, 0
        %1073 = vmatprep.subr.mxu0 0.0
        %1074 = vmatpush1.xpose.msra.mxu0 %v1071
        %1075 = vmatprep.subr.mxu0 0.0
        %1076 = vmatpush1.xpose.msra.mxu0 0.0
        %1077 = vmatprep.subr.mxu0 0.0
        %1078 = vmatpush1.xpose.msra.mxu0 0.0
        %1079 = vmatprep.subr.mxu0 0.0
        %1080 = vmatpush1.xpose.msra.mxu0 0.0
        %1081 = vmatprep.subr.mxu0 0.0
        %1082 = vmatpush1.xpose.msra.mxu0 0.0
        %1083 = vmatprep.subr.mxu0 0.0
        %1084 = vmatpush1.xpose.msra.mxu0 0.0
        %1085 = vmatprep.subr.mxu0 0.0
        %1086 = vmatpush1.xpose.msra.mxu0 0.0
        %1087 = vmatprep.subr.mxu0 0.0
        %1088 = vmatpush1.xpose.msra.mxu0 0.0
        %1089 = vmatprep.subr.mxu0 0.0
        %1090 = vmatpush1.xpose.msra.mxu0 0.0
        %1091 = vmatprep.subr.mxu0 0.0
        %1092 = vmatpush1.xpose.msra.mxu0 0.0
        %1093 = vmatprep.subr.mxu0 0.0
        %1094 = vmatpush1.xpose.msra.mxu0 0.0
        %1095 = vmatprep.subr.mxu0 0.0
        %1096 = vmatpush1.xpose.msra.mxu0 0.0
        %1097 = vmatprep.subr.mxu0 0.0
        %1098 = vmatpush1.xpose.msra.mxu0 0.0
        %1099 = vmatprep.subr.mxu0 0.0
        %1100 = vmatpush1.xpose.msra.mxu0 0.0
        %1101 = vmatprep.subr.mxu0 0.0
        %1102 = vmatpush1.xpose.msra.mxu0 0.0
        %1103 = vmatprep.subr.mxu0 0.0
        %1104 = vmatpush1.xpose.msra.mxu0 0.0
        %1105 = vmatprep.subr.mxu0 0.0
        %1106 = vmatpush1.xpose.msra.mxu0 0.0
        %1107 = vmatprep.subr.mxu0 0.0
        %1108 = vmatpush1.xpose.msra.mxu0 0.0
        %1109 = vmatprep.subr.mxu0 0.0
        %1110 = vmatpush1.xpose.msra.mxu0 0.0
        %1111 = vmatprep.subr.mxu0 0.0
        %1112 = vmatpush1.xpose.msra.mxu0 0.0
        %1113 = vmatprep.subr.mxu0 0.0
        %1114 = vmatpush1.xpose.msra.mxu0 0.0
        %1115 = vmatprep.subr.mxu0 0.0
        %1116 = vmatpush1.xpose.msra.mxu0 0.0
        %1117 = vmatprep.subr.mxu0 0.0
        %1118 = vmatpush1.xpose.msra.mxu0 0.0
        %1119 = vmatprep.subr.mxu0 0.0
        %1120 = vmatpush1.xpose.msra.mxu0 0.0
        %1121 = vmatprep.subr.mxu0 0.0
        %1122 = vmatpush1.xpose.msra.mxu0 0.0
        %1123 = vmatprep.subr.mxu0 0.0
        %1124 = vmatpush1.xpose.msra.mxu0 0.0
        %1125 = vmatprep.subr.mxu0 0.0
        %1126 = vmatpush1.xpose.msra.mxu0 0.0
        %1127 = vmatprep.subr.mxu0 0.0
        %1128 = vmatpush1.xpose.msra.mxu0 0.0
        %1129 = vmatprep.subr.mxu0 0.0
        %1130 = vmatpush1.xpose.msra.mxu0 0.0
        %1131 = vmatprep.subr.mxu0 0.0
        %1132 = vmatpush1.xpose.msra.mxu0 0.0
        %1133 = vmatprep.subr.mxu0 0.0
        %1134 = vmatpush1.xpose.msra.mxu0 0.0
        %1135 = vmatprep.subr.mxu0 0.0
        %1136 = vmatpush1.xpose.msra.mxu0 0.0
        %1137 = vmatprep.mubr.f32.mxu0 0.0
        %1138 = vmatmul.mubr.f32.gmra.mrb[0].mxu0 %v1069
        %v1139 = vpop.f32.mrb[0].mxu0
        %v1140 = vadd.f32 %v334, %v1139
        %v1141 = vpop.f32.mrb[0].mxu0
        %1142 = vdwg.mxu0
        %v1143 = vsel %vm418, %v1140, -inf
        %1144 = vmax.xlane.f32.xlu0 %v1143
        %v1145 = vpop.xlane.xlu0 %1144
        %v1146 = vsub.f32 %v1140, %v1145
        %v1147 = vmul.f32 %v1146, 1.442695
        %v1148 = vpow.pop %v1147
        %v1149 = vsel %vm418, %v1148, 0.0
        %1150 = vadd.xlane.f32.xlu0 %v1149
        %v1151 = vpop.xlane.xlu0 %1150
        %v1152 = vrcp.pop %v1151
        %v1153 = vmul.f32 %v1148, %v1152
        %s1154 = scalar_lea.vmem %s323, 16 [#allocation9]
        %1155 = vst.msk [vmem:[%s1154] sm:$0xff] %vm418, %v1153
        %v1164 = vrot.slane %v1018, 7
        %v1165 = vsel %vm376, %v1164, %v1017
        %v1166 = vrot.slane %v1019, 6
        %v1167 = vsel %vm379, %v1166, %v1165
        %v1168 = vrot.slane %v1020, 5
        %v1169 = vsel %vm382, %v1168, %v1167
        %v1170 = vrot.slane %v1021, 4
        %v1171 = vsel %vm385, %v1170, %v1169
        %v1172 = vrot.slane %v1022, 3
        %v1173 = vsel %vm388, %v1172, %v1171
        %v1174 = vrot.slane %v1023, 2
        %v1175 = vsel %vm391, %v1174, %v1173
        %v1176 = vrot.slane %v1024, 1
        %v1177 = vsel %vm394, %v1176, %v1175
        %v1180 = vsel %vm418, %v1153, 0
        %1182 = vmatprep.subr.mxu0 0.0
        %1183 = vmatpush1.msra.mxu0 %v1177
        %1184 = vmatprep.subr.mxu0 0.0
        %1185 = vmatpush1.msra.mxu0 0.0
        %1186 = vmatprep.subr.mxu0 0.0
        %1187 = vmatpush1.msra.mxu0 0.0
        %1188 = vmatprep.subr.mxu0 0.0
        %1189 = vmatpush1.msra.mxu0 0.0
        %1190 = vmatprep.subr.mxu0 0.0
        %1191 = vmatpush1.msra.mxu0 0.0
        %1192 = vmatprep.subr.mxu0 0.0
        %1193 = vmatpush1.msra.mxu0 0.0
        %1194 = vmatprep.subr.mxu0 0.0
        %1195 = vmatpush1.msra.mxu0 0.0
        %1196 = vmatprep.subr.mxu0 0.0
        %1197 = vmatpush1.msra.mxu0 0.0
        %1198 = vmatprep.subr.mxu0 0.0
        %1199 = vmatpush1.msra.mxu0 0.0
        %1200 = vmatprep.subr.mxu0 0.0
        %1201 = vmatpush1.msra.mxu0 0.0
        %1202 = vmatprep.subr.mxu0 0.0
        %1203 = vmatpush1.msra.mxu0 0.0
        %1204 = vmatprep.subr.mxu0 0.0
        %1205 = vmatpush1.msra.mxu0 0.0
        %1206 = vmatprep.subr.mxu0 0.0
        %1207 = vmatpush1.msra.mxu0 0.0
        %1208 = vmatprep.subr.mxu0 0.0
        %1209 = vmatpush1.msra.mxu0 0.0
        %1210 = vmatprep.subr.mxu0 0.0
        %1211 = vmatpush1.msra.mxu0 0.0
        %1212 = vmatprep.subr.mxu0 0.0
        %1213 = vmatpush1.msra.mxu0 0.0
        %1214 = vmatprep.subr.mxu0 0.0
        %1215 = vmatpush1.msra.mxu0 0.0
        %1216 = vmatprep.subr.mxu0 0.0
        %1217 = vmatpush1.msra.mxu0 0.0
        %1218 = vmatprep.subr.mxu0 0.0
        %1219 = vmatpush1.msra.mxu0 0.0
        %1220 = vmatprep.subr.mxu0 0.0
        %1221 = vmatpush1.msra.mxu0 0.0
        %1222 = vmatprep.subr.mxu0 0.0
        %1223 = vmatpush1.msra.mxu0 0.0
        %1224 = vmatprep.subr.mxu0 0.0
        %1225 = vmatpush1.msra.mxu0 0.0
        %1226 = vmatprep.subr.mxu0 0.0
        %1227 = vmatpush1.msra.mxu0 0.0
        %1228 = vmatprep.subr.mxu0 0.0
        %1229 = vmatpush1.msra.mxu0 0.0
        %1230 = vmatprep.subr.mxu0 0.0
        %1231 = vmatpush1.msra.mxu0 0.0
        %1232 = vmatprep.subr.mxu0 0.0
        %1233 = vmatpush1.msra.mxu0 0.0
        %1234 = vmatprep.subr.mxu0 0.0
        %1235 = vmatpush1.msra.mxu0 0.0
        %1236 = vmatprep.subr.mxu0 0.0
        %1237 = vmatpush1.msra.mxu0 0.0
        %1238 = vmatprep.subr.mxu0 0.0
        %1239 = vmatpush1.msra.mxu0 0.0
        %1240 = vmatprep.subr.mxu0 0.0
        %1241 = vmatpush1.msra.mxu0 0.0
        %1242 = vmatprep.subr.mxu0 0.0
        %1243 = vmatpush1.msra.mxu0 0.0
        %1244 = vmatprep.subr.mxu0 0.0
        %1245 = vmatpush1.msra.mxu0 0.0
        %1246 = vmatprep.mubr.f32.mxu0 0.0
        %1247 = vmatmul.mubr.f32.gmra.mrb[0].mxu0 %v1180
        %v1248 = vpop.f32.mrb[0].mxu0
        %v1249 = vadd.f32 0.0, %v1248
        %v1250 = vpop.f32.mrb[0].mxu0
        %1251 = vdwg.mxu0
        %v1253 = vcombine.high %v1249, %v1249
        %v1255 = vunpack.c.l.s4 1966171168
        %v1256 = vunpack.c.0.s8 %v1255
        %v1257 = vlaneseq
        %v1258 = vshrl.u32 %v1257, 7
        %v1259 = vsub.s32 %v1256, %v1258
        %v1260 = vrot.slane %v1249, %v1259
        %v1262 = vunpack.c.l.s4 1966171168
        %v1263 = vunpack.c.0.s8 %v1262
        %v1264 = vlaneseq
        %v1265 = vshrl.u32 %v1264, 7
        %v1266 = vsub.s32 %v1263, %v1265
        %v1267 = vrot.slane %v1253, %v1266
        %v1268 = vcombine.high %v1260, %v1260
        %v1269 = vcombine.high %v1267, %v1267
        %v1271 = vunpack.c.l.s4 1966171168
        %v1272 = vunpack.c.0.s8 %v1271
        %v1273 = vlaneseq
        %v1274 = vshrl.u32 %v1273, 7
        %v1275 = vsub.s32 %v1272, %v1274
        %v1276 = vrot.slane %v1260, %v1275
        %v1278 = vunpack.c.l.s4 1966171168
        %v1279 = vunpack.c.0.s8 %v1278
        %v1280 = vlaneseq
        %v1281 = vshrl.u32 %v1280, 7
        %v1282 = vsub.s32 %v1279, %v1281
        %v1283 = vrot.slane %v1267, %v1282
        %v1285 = vunpack.c.l.s4 1966171168
        %v1286 = vunpack.c.0.s8 %v1285
        %v1287 = vlaneseq
        %v1288 = vshrl.u32 %v1287, 7
        %v1289 = vsub.s32 %v1286, %v1288
        %v1290 = vrot.slane %v1268, %v1289
        %v1292 = vunpack.c.l.s4 1966171168
        %v1293 = vunpack.c.0.s8 %v1292
        %v1294 = vlaneseq
        %v1295 = vshrl.u32 %v1294, 7
        %v1296 = vsub.s32 %v1293, %v1295
        %v1297 = vrot.slane %v1269, %v1296
        %v1298 = vcombine.high %v1276, %v1276
        %v1299 = vcombine.high %v1283, %v1283
        %v1300 = vcombine.high %v1290, %v1290
        %v1301 = vcombine.high %v1297, %v1297
        %1310 = vst.msk [vmem:[%s316 + $0x2] sm:$0x1] %vm659, %v1276
        %1311 = vst.msk [vmem:[%s316 + $0x6] sm:$0x1] %vm659, %v1290
        %1312 = vst.msk [vmem:[%s316 + $0xa] sm:$0x1] %vm659, %v1298
        %1313 = vst.msk [vmem:[%s316 + $0xe] sm:$0x1] %vm659, %v1300
        %1314 = vst.msk [vmem:[%s316 + $0x12] sm:$0x1] %vm659, %v1283
        %1315 = vst.msk [vmem:[%s316 + $0x16] sm:$0x1] %vm659, %v1297
        %1316 = vst.msk [vmem:[%s316 + $0x1a] sm:$0x1] %vm659, %v1299
        %1317 = vst.msk [vmem:[%s316 + $0x1e] sm:$0x1] %vm659, %v1301
        %v1318 = vld [vmem:[%s266 + $0x3] sm:$0x1]
        %v1319 = vld [vmem:[%s266 + $0x7] sm:$0x1]
        %v1320 = vld [vmem:[%s266 + $0xb] sm:$0x1]
        %v1321 = vld [vmem:[%s266 + $0xf] sm:$0x1]
        %v1322 = vld [vmem:[%s266 + $0x13] sm:$0x1]
        %v1323 = vld [vmem:[%s266 + $0x17] sm:$0x1]
        %v1324 = vld [vmem:[%s266 + $0x1b] sm:$0x1]
        %v1325 = vld [vmem:[%s266 + $0x1f] sm:$0x1]
        %v1326 = vmul.f32 %v1318, 0.35355338
        %v1327 = vmul.f32 %v1319, 0.35355338
        %v1328 = vmul.f32 %v1320, 0.35355338
        %v1329 = vmul.f32 %v1321, 0.35355338
        %v1330 = vmul.f32 %v1322, 0.35355338
        %v1331 = vmul.f32 %v1323, 0.35355338
        %v1332 = vmul.f32 %v1324, 0.35355338
        %v1333 = vmul.f32 %v1325, 0.35355338
        %v1334 = vld [vmem:[%s275 + $0x3] sm:$0x1]
        %v1335 = vld [vmem:[%s275 + $0x7] sm:$0x1]
        %v1336 = vld [vmem:[%s275 + $0xb] sm:$0x1]
        %v1337 = vld [vmem:[%s275 + $0xf] sm:$0x1]
        %v1338 = vld [vmem:[%s275 + $0x13] sm:$0x1]
        %v1339 = vld [vmem:[%s275 + $0x17] sm:$0x1]
        %v1340 = vld [vmem:[%s275 + $0x1b] sm:$0x1]
        %v1341 = vld [vmem:[%s275 + $0x1f] sm:$0x1]
        %v1342 = vld [vmem:[%s284 + $0x3] sm:$0x1]
        %v1343 = vld [vmem:[%s284 + $0x7] sm:$0x1]
        %v1344 = vld [vmem:[%s284 + $0xb] sm:$0x1]
        %v1345 = vld [vmem:[%s284 + $0xf] sm:$0x1]
        %v1346 = vld [vmem:[%s284 + $0x13] sm:$0x1]
        %v1347 = vld [vmem:[%s284 + $0x17] sm:$0x1]
        %v1348 = vld [vmem:[%s284 + $0x1b] sm:$0x1]
        %v1349 = vld [vmem:[%s284 + $0x1f] sm:$0x1]
        %v1358 = vrot.slane %v1327, 7
        %v1359 = vsel %vm376, %v1358, %v1326
        %v1360 = vrot.slane %v1328, 6
        %v1361 = vsel %vm379, %v1360, %v1359
        %v1362 = vrot.slane %v1329, 5
        %v1363 = vsel %vm382, %v1362, %v1361
        %v1364 = vrot.slane %v1330, 4
        %v1365 = vsel %vm385, %v1364, %v1363
        %v1366 = vrot.slane %v1331, 3
        %v1367 = vsel %vm388, %v1366, %v1365
        %v1368 = vrot.slane %v1332, 2
        %v1369 = vsel %vm391, %v1368, %v1367
        %v1370 = vrot.slane %v1333, 1
        %v1371 = vsel %vm394, %v1370, %v1369
        %v1380 = vrot.slane %v1335, 7
        %v1381 = vsel %vm376, %v1380, %v1334
        %v1382 = vrot.slane %v1336, 6
        %v1383 = vsel %vm379, %v1382, %v1381
        %v1384 = vrot.slane %v1337, 5
        %v1385 = vsel %vm382, %v1384, %v1383
        %v1386 = vrot.slane %v1338, 4
        %v1387 = vsel %vm385, %v1386, %v1385
        %v1388 = vrot.slane %v1339, 3
        %v1389 = vsel %vm388, %v1388, %v1387
        %v1390 = vrot.slane %v1340, 2
        %v1391 = vsel %vm391, %v1390, %v1389
        %v1392 = vrot.slane %v1341, 1
        %v1393 = vsel %vm394, %v1392, %v1391
        %v1394 = vsel %vm418, %v1371, 0
        %v1396 = vsel %vm418, %v1393, 0
        %1398 = vmatprep.subr.mxu0 0.0
        %1399 = vmatpush1.xpose.msra.mxu0 %v1396
        %1400 = vmatprep.subr.mxu0 0.0
        %1401 = vmatpush1.xpose.msra.mxu0 0.0
        %1402 = vmatprep.subr.mxu0 0.0
        %1403 = vmatpush1.xpose.msra.mxu0 0.0
        %1404 = vmatprep.subr.mxu0 0.0
        %1405 = vmatpush1.xpose.msra.mxu0 0.0
        %1406 = vmatprep.subr.mxu0 0.0
        %1407 = vmatpush1.xpose.msra.mxu0 0.0
        %1408 = vmatprep.subr.mxu0 0.0
        %1409 = vmatpush1.xpose.msra.mxu0 0.0
        %1410 = vmatprep.subr.mxu0 0.0
        %1411 = vmatpush1.xpose.msra.mxu0 0.0
        %1412 = vmatprep.subr.mxu0 0.0
        %1413 = vmatpush1.xpose.msra.mxu0 0.0
        %1414 = vmatprep.subr.mxu0 0.0
        %1415 = vmatpush1.xpose.msra.mxu0 0.0
        %1416 = vmatprep.subr.mxu0 0.0
        %1417 = vmatpush1.xpose.msra.mxu0 0.0
        %1418 = vmatprep.subr.mxu0 0.0
        %1419 = vmatpush1.xpose.msra.mxu0 0.0
        %1420 = vmatprep.subr.mxu0 0.0
        %1421 = vmatpush1.xpose.msra.mxu0 0.0
        %1422 = vmatprep.subr.mxu0 0.0
        %1423 = vmatpush1.xpose.msra.mxu0 0.0
        %1424 = vmatprep.subr.mxu0 0.0
        %1425 = vmatpush1.xpose.msra.mxu0 0.0
        %1426 = vmatprep.subr.mxu0 0.0
        %1427 = vmatpush1.xpose.msra.mxu0 0.0
        %1428 = vmatprep.subr.mxu0 0.0
        %1429 = vmatpush1.xpose.msra.mxu0 0.0
        %1430 = vmatprep.subr.mxu0 0.0
        %1431 = vmatpush1.xpose.msra.mxu0 0.0
        %1432 = vmatprep.subr.mxu0 0.0
        %1433 = vmatpush1.xpose.msra.mxu0 0.0
        %1434 = vmatprep.subr.mxu0 0.0
        %1435 = vmatpush1.xpose.msra.mxu0 0.0
        %1436 = vmatprep.subr.mxu0 0.0
        %1437 = vmatpush1.xpose.msra.mxu0 0.0
        %1438 = vmatprep.subr.mxu0 0.0
        %1439 = vmatpush1.xpose.msra.mxu0 0.0
        %1440 = vmatprep.subr.mxu0 0.0
        %1441 = vmatpush1.xpose.msra.mxu0 0.0
        %1442 = vmatprep.subr.mxu0 0.0
        %1443 = vmatpush1.xpose.msra.mxu0 0.0
        %1444 = vmatprep.subr.mxu0 0.0
        %1445 = vmatpush1.xpose.msra.mxu0 0.0
        %1446 = vmatprep.subr.mxu0 0.0
        %1447 = vmatpush1.xpose.msra.mxu0 0.0
        %1448 = vmatprep.subr.mxu0 0.0
        %1449 = vmatpush1.xpose.msra.mxu0 0.0
        %1450 = vmatprep.subr.mxu0 0.0
        %1451 = vmatpush1.xpose.msra.mxu0 0.0
        %1452 = vmatprep.subr.mxu0 0.0
        %1453 = vmatpush1.xpose.msra.mxu0 0.0
        %1454 = vmatprep.subr.mxu0 0.0
        %1455 = vmatpush1.xpose.msra.mxu0 0.0
        %1456 = vmatprep.subr.mxu0 0.0
        %1457 = vmatpush1.xpose.msra.mxu0 0.0
        %1458 = vmatprep.subr.mxu0 0.0
        %1459 = vmatpush1.xpose.msra.mxu0 0.0
        %1460 = vmatprep.subr.mxu0 0.0
        %1461 = vmatpush1.xpose.msra.mxu0 0.0
        %1462 = vmatprep.mubr.f32.mxu0 0.0
        %1463 = vmatmul.mubr.f32.gmra.mrb[0].mxu0 %v1394
        %v1464 = vpop.f32.mrb[0].mxu0
        %v1465 = vadd.f32 %v334, %v1464
        %v1466 = vpop.f32.mrb[0].mxu0
        %1467 = vdwg.mxu0
        %v1468 = vsel %vm418, %v1465, -inf
        %1469 = vmax.xlane.f32.xlu0 %v1468
        %v1470 = vpop.xlane.xlu0 %1469
        %v1471 = vsub.f32 %v1465, %v1470
        %v1472 = vmul.f32 %v1471, 1.442695
        %v1473 = vpow.pop %v1472
        %v1474 = vsel %vm418, %v1473, 0.0
        %1475 = vadd.xlane.f32.xlu0 %v1474
        %v1476 = vpop.xlane.xlu0 %1475
        %v1477 = vrcp.pop %v1476
        %v1478 = vmul.f32 %v1473, %v1477
        %s1479 = scalar_lea.vmem %s323, 24 [#allocation9]
        %1480 = vst.msk [vmem:[%s1479] sm:$0xff] %vm418, %v1478
        %v1489 = vrot.slane %v1343, 7
        %v1490 = vsel %vm376, %v1489, %v1342
        %v1491 = vrot.slane %v1344, 6
        %v1492 = vsel %vm379, %v1491, %v1490
        %v1493 = vrot.slane %v1345, 5
        %v1494 = vsel %vm382, %v1493, %v1492
        %v1495 = vrot.slane %v1346, 4
        %v1496 = vsel %vm385, %v1495, %v1494
        %v1497 = vrot.slane %v1347, 3
        %v1498 = vsel %vm388, %v1497, %v1496
        %v1499 = vrot.slane %v1348, 2
        %v1500 = vsel %vm391, %v1499, %v1498
        %v1501 = vrot.slane %v1349, 1
        %v1502 = vsel %vm394, %v1501, %v1500
        %v1505 = vsel %vm418, %v1478, 0
        %1507 = vmatprep.subr.mxu0 0.0
        %1508 = vmatpush1.msra.mxu0 %v1502
        %1509 = vmatprep.subr.mxu0 0.0
        %1510 = vmatpush1.msra.mxu0 0.0
        %1511 = vmatprep.subr.mxu0 0.0
        %1512 = vmatpush1.msra.mxu0 0.0
        %1513 = vmatprep.subr.mxu0 0.0
        %1514 = vmatpush1.msra.mxu0 0.0
        %1515 = vmatprep.subr.mxu0 0.0
        %1516 = vmatpush1.msra.mxu0 0.0
        %1517 = vmatprep.subr.mxu0 0.0
        %1518 = vmatpush1.msra.mxu0 0.0
        %1519 = vmatprep.subr.mxu0 0.0
        %1520 = vmatpush1.msra.mxu0 0.0
        %1521 = vmatprep.subr.mxu0 0.0
        %1522 = vmatpush1.msra.mxu0 0.0
        %1523 = vmatprep.subr.mxu0 0.0
        %1524 = vmatpush1.msra.mxu0 0.0
        %1525 = vmatprep.subr.mxu0 0.0
        %1526 = vmatpush1.msra.mxu0 0.0
        %1527 = vmatprep.subr.mxu0 0.0
        %1528 = vmatpush1.msra.mxu0 0.0
        %1529 = vmatprep.subr.mxu0 0.0
        %1530 = vmatpush1.msra.mxu0 0.0
        %1531 = vmatprep.subr.mxu0 0.0
        %1532 = vmatpush1.msra.mxu0 0.0
        %1533 = vmatprep.subr.mxu0 0.0
        %1534 = vmatpush1.msra.mxu0 0.0
        %1535 = vmatprep.subr.mxu0 0.0
        %1536 = vmatpush1.msra.mxu0 0.0
        %1537 = vmatprep.subr.mxu0 0.0
        %1538 = vmatpush1.msra.mxu0 0.0
        %1539 = vmatprep.subr.mxu0 0.0
        %1540 = vmatpush1.msra.mxu0 0.0
        %1541 = vmatprep.subr.mxu0 0.0
        %1542 = vmatpush1.msra.mxu0 0.0
        %1543 = vmatprep.subr.mxu0 0.0
        %1544 = vmatpush1.msra.mxu0 0.0
        %1545 = vmatprep.subr.mxu0 0.0
        %1546 = vmatpush1.msra.mxu0 0.0
        %1547 = vmatprep.subr.mxu0 0.0
        %1548 = vmatpush1.msra.mxu0 0.0
        %1549 = vmatprep.subr.mxu0 0.0
        %1550 = vmatpush1.msra.mxu0 0.0
        %1551 = vmatprep.subr.mxu0 0.0
        %1552 = vmatpush1.msra.mxu0 0.0
        %1553 = vmatprep.subr.mxu0 0.0
        %1554 = vmatpush1.msra.mxu0 0.0
        %1555 = vmatprep.subr.mxu0 0.0
        %1556 = vmatpush1.msra.mxu0 0.0
        %1557 = vmatprep.subr.mxu0 0.0
        %1558 = vmatpush1.msra.mxu0 0.0
        %1559 = vmatprep.subr.mxu0 0.0
        %1560 = vmatpush1.msra.mxu0 0.0
        %1561 = vmatprep.subr.mxu0 0.0
        %1562 = vmatpush1.msra.mxu0 0.0
        %1563 = vmatprep.subr.mxu0 0.0
        %1564 = vmatpush1.msra.mxu0 0.0
        %1565 = vmatprep.subr.mxu0 0.0
        %1566 = vmatpush1.msra.mxu0 0.0
        %1567 = vmatprep.subr.mxu0 0.0
        %1568 = vmatpush1.msra.mxu0 0.0
        %1569 = vmatprep.subr.mxu0 0.0
        %1570 = vmatpush1.msra.mxu0 0.0
        %1571 = vmatprep.mubr.f32.mxu0 0.0
        %1572 = vmatmul.mubr.f32.gmra.mrb[0].mxu0 %v1505
        %v1573 = vpop.f32.mrb[0].mxu0
        %v1574 = vadd.f32 0.0, %v1573
        %v1575 = vpop.f32.mrb[0].mxu0
        %1576 = vdwg.mxu0
        %v1578 = vcombine.high %v1574, %v1574
        %v1580 = vunpack.c.l.s4 1966171168
        %v1581 = vunpack.c.0.s8 %v1580
        %v1582 = vlaneseq
        %v1583 = vshrl.u32 %v1582, 7
        %v1584 = vsub.s32 %v1581, %v1583
        %v1585 = vrot.slane %v1574, %v1584
        %v1587 = vunpack.c.l.s4 1966171168
        %v1588 = vunpack.c.0.s8 %v1587
        %v1589 = vlaneseq
        %v1590 = vshrl.u32 %v1589, 7
        %v1591 = vsub.s32 %v1588, %v1590
        %v1592 = vrot.slane %v1578, %v1591
        %v1593 = vcombine.high %v1585, %v1585
        %v1594 = vcombine.high %v1592, %v1592
        %v1596 = vunpack.c.l.s4 1966171168
        %v1597 = vunpack.c.0.s8 %v1596
        %v1598 = vlaneseq
        %v1599 = vshrl.u32 %v1598, 7
        %v1600 = vsub.s32 %v1597, %v1599
        %v1601 = vrot.slane %v1585, %v1600
        %v1603 = vunpack.c.l.s4 1966171168
        %v1604 = vunpack.c.0.s8 %v1603
        %v1605 = vlaneseq
        %v1606 = vshrl.u32 %v1605, 7
        %v1607 = vsub.s32 %v1604, %v1606
        %v1608 = vrot.slane %v1592, %v1607
        %v1610 = vunpack.c.l.s4 1966171168
        %v1611 = vunpack.c.0.s8 %v1610
        %v1612 = vlaneseq
        %v1613 = vshrl.u32 %v1612, 7
        %v1614 = vsub.s32 %v1611, %v1613
        %v1615 = vrot.slane %v1593, %v1614
        %v1617 = vunpack.c.l.s4 1966171168
        %v1618 = vunpack.c.0.s8 %v1617
        %v1619 = vlaneseq
        %v1620 = vshrl.u32 %v1619, 7
        %v1621 = vsub.s32 %v1618, %v1620
        %v1622 = vrot.slane %v1594, %v1621
        %v1623 = vcombine.high %v1601, %v1601
        %v1624 = vcombine.high %v1608, %v1608
        %v1625 = vcombine.high %v1615, %v1615
        %v1626 = vcombine.high %v1622, %v1622
        %1635 = vst.msk [vmem:[%s316 + $0x3] sm:$0x1] %vm659, %v1601
        %1636 = vst.msk [vmem:[%s316 + $0x7] sm:$0x1] %vm659, %v1615
        %1637 = vst.msk [vmem:[%s316 + $0xb] sm:$0x1] %vm659, %v1623
        %1638 = vst.msk [vmem:[%s316 + $0xf] sm:$0x1] %vm659, %v1625
        %1639 = vst.msk [vmem:[%s316 + $0x13] sm:$0x1] %vm659, %v1608
        %1640 = vst.msk [vmem:[%s316 + $0x17] sm:$0x1] %vm659, %v1622
        %1641 = vst.msk [vmem:[%s316 + $0x1b] sm:$0x1] %vm659, %v1624
        %1642 = vst.msk [vmem:[%s316 + $0x1f] sm:$0x1] %vm659, %v1626
        %s1643 = sand.u32 %s130, 1
        %s1644 = scalar_lea.sflag [#allocation4], %s1643
        %s1645 = sand.u32 %s130, 1
        %s1646 = smul.addr %s1645, 32
        %s1647 = scalar_lea.vmem [#allocation8], %s1646
        %s1648 = sand.u32 %s158, 1
        %s1649 = scalar_lea.sflag [#allocation10], %s1648
        %s1650 = sand.u32 %s158, 1
        %s1651 = smul.addr %s1650, 32
        %s1652 = scalar_lea.vmem [#allocation9], %s1651
        // Predicated region
        $region45: #{tpu_custom_call.1} parent=31 // pred_check
          %p1653 = pneg %p140
        $region46: #{tpu_custom_call.1} parent=31 // pred_check_branch
          %1655 = sbr.rel (%p1653) target = $region48
        $region47: #{tpu_custom_call.1} parent=31 // pred_region
          %s1656 = smul.u32 8, %s33
          %s1658 = ssub.s32 512, 512
          %1659 = vsyncadd %s1644, %s1658
          %s1660 = smul.addr %s32, 8
          %s1661 = sadd.s32 %s1656, %s1660
          %s1662 = smul.addr %s1661, 64
          %s1663 = scalar_lea.hbm %s3, %s1662
          %s1664 = sshll.u32 %s1647, 4
          %s1665 = int_to_ptr.vmem [resolvable:$true] %s1664
          %1670 = dma.vmem_to_hbm [thread:$0]  %s1665, 512, %s1663, %s1644, 64, 64, 4
        $region48: #{tpu_custom_call.1} parent=31 // pred_fallthru
          _
        // Predicated region
        $region49: #{tpu_custom_call.1} parent=31 // pred_check
          %p1671 = pneg %p168
        $region50: #{tpu_custom_call.1} parent=31 // pred_check_branch
          %1673 = sbr.rel (%p1671) target = $region52
        $region51: #{tpu_custom_call.1} parent=31 // pred_region
          %s1675 = ssub.s32 512, 512
          %1676 = vsyncadd %s1649, %s1675
          %s1677 = smul.addr %s32, 4
          %s1678 = sadd.s32 %s33, %s1677
          %s1679 = smul.addr %s1678, 128
          %s1680 = scalar_lea.hbm %s4, %s1679
          %s1681 = sshll.u32 %s1652, 4
          %s1682 = int_to_ptr.vmem [resolvable:$true] %s1681
          %1687 = dma.vmem_to_hbm [thread:$0]  %s1682, 512, %s1680, %s1649, 128, 128, 8
        $region52: #{tpu_custom_call.1} parent=31 // pred_fallthru
          _
      $region32: #{tpu_custom_call.1} parent=5 // pred_fallthru
        _
      %p1688 = scmp.le.s32.totalorder 2, %s23
      // Predicated region
      $region53: #{tpu_custom_call.1} parent=5 // pred_check
        %p1689 = pneg %p1688
      $region54: #{tpu_custom_call.1} parent=5 // pred_check_branch
        %1691 = sbr.rel (%p1689) target = $region56
      $region55: #{tpu_custom_call.1} parent=5 // pred_region
        %s1692 = ssub.s32 %s23, 2
        // Predicated region
        $region57: #{tpu_custom_call.1} parent=55 // pred_check
          %p1693 = pneg %p146
        $region58: #{tpu_custom_call.1} parent=55 // pred_check_branch
          %1695 = sbr.rel (%p1693) target = $region60
        $region59: #{tpu_custom_call.1} parent=55 // pred_region
          %s1696 = sand.u32 %s131, 1
          %s1697 = scalar_lea.sflag [#allocation4], %s1696
          %s1698 = sand.u32 %s131, 1
          %s1699 = smul.addr %s1698, 32
          %s1700 = scalar_lea.vmem [#allocation8], %s1699
          %1701 = dma.done %s1697, 512
        $region60: #{tpu_custom_call.1} parent=55 // pred_fallthru
          _
        // Predicated region
        $region61: #{tpu_custom_call.1} parent=55 // pred_check
          %p1702 = pneg %p174
        $region62: #{tpu_custom_call.1} parent=55 // pred_check_branch
          %1704 = sbr.rel (%p1702) target = $region64
        $region63: #{tpu_custom_call.1} parent=55 // pred_region
          %s1705 = sand.u32 %s159, 1
          %s1706 = scalar_lea.sflag [#allocation10], %s1705
          %s1707 = sand.u32 %s159, 1
          %s1708 = smul.addr %s1707, 32
          %s1709 = scalar_lea.vmem [#allocation9], %s1708
          %1710 = dma.done %s1706, 512
        $region64: #{tpu_custom_call.1} parent=55 // pred_fallthru
          _
      $region56: #{tpu_custom_call.1} parent=5 // pred_fallthru
        _
    $region6: #{tpu_custom_call.1} parent=1 // loop_footer
      %s27 = sadd.s32 1, %s23
    $region7: #{tpu_custom_call.1} parent=1 // loop_footer_branch
      %22 = sbr.rel target = $region3
    $region8: #{tpu_custom_call.1} parent=1 // loop_exit
      _
    %1711 = vsyncpa [#allocation3], 1
    %s1712 = scalar_lea.sflag [#allocation3], 1
    %1713 = vsyncpa %s1712, 1
    %1714 = vsyncpa [#allocation6], 1
    %s1715 = scalar_lea.sflag [#allocation6], 1
    %1716 = vsyncpa %s1715, 1
    %1717 = vsyncpa [#allocation4], 1
    %s1718 = scalar_lea.sflag [#allocation4], 1
    %1719 = vsyncpa %s1718, 1
    %1720 = vsyncpa [#allocation10], 1
    %s1721 = scalar_lea.sflag [#allocation10], 1
    %1722 = vsyncpa %s1721, 1

</llo_original>
